<compile_context>
chip_gen: v7x
topology: tpu7x:2x2x1
jax: 0.10.0
libtpu: 0.0.40
codegen_flags: <defaults>
</compile_context>

<pallas_src>
import math
import jax
import jax.numpy as jnp
from jax import lax
from jax.experimental import pallas as pl
from jax.experimental.pallas import tpu as pltpu

PI = math.pi
NEG_SLOPE = 0.5
NEG_SLOPE_SQ = NEG_SLOPE * NEG_SLOPE   # leaky(leaky(x,0.5),0.5) == leaky(x,0.25) exactly
BN_EPS = 1e-5


def _leaky(x, slope):
    # LeakyReLU for 0 < slope < 1: max(x, slope*x) (drops the compare vs. where-form).
    return jnp.maximum(x, slope * x)


def _round_up(v, m):
    return ((v + m - 1) // m) * m


# ---------------------------------------------------------------------------
# Pallas kernel: one row-major (bt, F) batch block per grid step; all weights,
# packed per-layer vectors and head constants are VMEM-resident.
# Compute is feature-major (batch on the 128-lane axis) for lane-dense VPU/EUP
# work; a single in-kernel transpose converts the result back to row-major.
# ---------------------------------------------------------------------------
def make_dense_ae_kernel(n_enc, n_dec):
    def post_linear(h, p):
        # p: (out, 3) packed [bias, bn_scale, bn_shift]
        b, sc, sh = p[:, 0:1], p[:, 1:2], p[:, 2:3]
        h = _leaky(h + b, NEG_SLOPE)            # activation after Linear
        return _leaky(h * sc + sh, NEG_SLOPE_SQ)  # BN (eval, folded) + collapsed leakys

    def kernel(*refs):
        it = iter(refs)
        x_ref = next(it)                         # (bt, F) f32 row-major batch block
        gates_ref = next(it)                     # (F, 2) [tanh_scale, relu_flag]
        enc = [(next(it), next(it)) for _ in range(n_enc)]
        zw_ref, zb_ref = next(it), next(it)
        dec = [(next(it), next(it)) for _ in range(n_dec)]
        xw_ref, xb_ref = next(it), next(it)
        x_bar_ref = next(it)                     # (bt, F) f32 out, row-major
        z_ref = next(it)                         # (latent, bt) f32 out, feature-major

        # First encoder layer: NT contraction (contract the F axis of both
        # operands) -> feature-major (out, bt).  Consumes the row-major block
        # directly; no explicit input transpose, no wrapper transpose of x.
        w0_ref, p0_ref = enc[0]
        h = lax.dot_general(
            w0_ref[...], x_ref[...].astype(jnp.bfloat16),
            dimension_numbers=(((1,), (1,)), ((), ())),
            preferred_element_type=jnp.float32)
        h = post_linear(h, p0_ref[...])

        for w_ref, p_ref in enc[1:]:
            h = jnp.dot(w_ref[...], h.astype(jnp.bfloat16),
                        preferred_element_type=jnp.float32)
            h = post_linear(h, p_ref[...])

        # ---------------- latent (no activation) ----------------
        z = jnp.dot(zw_ref[...], h.astype(jnp.bfloat16),
                    preferred_element_type=jnp.float32) + zb_ref[...]

        # ---------------- decoder ----------------
        d = z
        for w_ref, p_ref in dec:
            d = jnp.dot(w_ref[...], d.astype(jnp.bfloat16),
                        preferred_element_type=jnp.float32)
            d = post_linear(d, p_ref[...])

        rec = jnp.dot(xw_ref[...], d.astype(jnp.bfloat16),
                      preferred_element_type=jnp.float32) + xb_ref[...]   # (F, bt)

        # Output head, feature-major (lane-dense), single select:
        # eta/phi rows -> scaled tanh, E/pt/N rows -> relu.
        gates = gates_ref[...]
        tanh_scale = gates[:, 0:1]
        relu_flag = gates[:, 1:2]
        x_bar_fm = jnp.where(relu_flag > 0.0,
                             jnp.maximum(rec, 0.0),
                             tanh_scale * jnp.tanh(rec))

        # Single in-kernel (XLU) transpose back to the caller's row-major layout.
        # The nonzero mask is re-read from x_ref here (epilogue) instead of being
        # held live across the whole network.
        x_bar_rm = x_bar_fm.T                                   # (bt, F)
        x_bar_ref[...] = jnp.where(x_ref[...] != 0.0, x_bar_rm, 0.0)
        z_ref[...] = z

    return kernel


# ---------------------------------------------------------------------------
# Parameter construction (deterministic, in-script) -- mirrors DenseAE.__init__
# Weights use the PyTorch nn.Linear layout: (out_features, in_features).
# BatchNorm running stats are folded into (scale, shift) eval-mode vectors.
# ---------------------------------------------------------------------------
def init_dense_ae_params(key, input_shape, hidden_channels, latent_dim):
    keys = iter(jax.random.split(key, 8 * (2 * len(hidden_channels) + 2)))

    def linear(fan_in, fan_out):
        w = jax.random.normal(next(keys), (fan_out, fan_in), jnp.float32)
        w = w * (1.0 / math.sqrt(fan_in))
        b = 0.1 * jax.random.normal(next(keys), (fan_out,), jnp.float32)
        return w, b

    def bn(fout):
        gamma = 1.0 + 0.1 * jax.random.normal(next(keys), (fout,), jnp.float32)
        beta = 0.1 * jax.random.normal(next(keys), (fout,), jnp.float32)
        run_mean = jnp.zeros((fout,), jnp.float32)
        run_var = jnp.ones((fout,), jnp.float32)
        scale = gamma / jnp.sqrt(run_var + BN_EPS)
        shift = beta - run_mean * scale
        return scale, shift

    enc = []
    enc_dims = [input_shape] + list(hidden_channels)
    for i in range(len(hidden_channels)):
        w, b = linear(enc_dims[i], enc_dims[i + 1])
        scale, shift = bn(enc_dims[i + 1])
        enc.append((w, b, scale, shift))

    zw, zb = linear(hidden_channels[-1], latent_dim)

    dec = []
    dec_dims = [latent_dim] + list(hidden_channels[::-1])
    for i in range(len(hidden_channels)):
        w, b = linear(dec_dims[i], dec_dims[i + 1])
        scale, shift = bn(dec_dims[i + 1])
        dec.append((w, b, scale, shift))

    xw, xb = linear(hidden_channels[0], input_shape)

    return {"enc": enc, "z": (zw, zb), "dec": dec, "xbar": (xw, xb)}


def _head_gates(input_shape):
    # access_idx offsets are all multiples of 4, so the strided PyTorch slicing
    # collapses to a (column % 4) classification for both input_shape 12 and 124.
    if input_shape == 124:
        feats = "E,pt,eta,phi".split(",")
    elif input_shape == 12:
        feats = "N,pt,eta,phi".split(",")
    else:
        raise ValueError("input_shape must be 12 or 124")
    i_eta, i_phi = feats.index("eta"), feats.index("phi")
    col = jnp.arange(input_shape) % 4
    tanh_scale = jnp.where(col == i_eta, 4.0, jnp.where(col == i_phi, PI, 0.0))
    relu_flag = jnp.where((col == i_eta) | (col == i_phi), 0.0, 1.0)
    return jnp.stack([tanh_scale, relu_flag], axis=1).astype(jnp.float32)  # (F, 2)


# ---------------------------------------------------------------------------
# Wrapper: row-major batch blocks in/out, resident weights, no batch padding.
# ---------------------------------------------------------------------------
def dense_ae_forward(x, params, input_shape, latent_dim, *, b_tile=4096):
    B, F = x.shape
    assert F == input_shape
    gates = _head_gates(input_shape)

    # ---- batch tiling ----
    cap = max(128, _round_up(int(b_tile), 128))
    n_steps = max(1, -(-B // cap))
    if B > 128 and n_steps < 2:
        n_steps = 2                     # >=2 grid steps so both v7x TCs get work
    bt = _round_up(-(-B // n_steps), 128)
    # Conservative per-batch-lane VMEM estimate (128-lane-padded row-major I/O,
    # double-buffered, plus feature-major activation headroom) used to keep the
    # tile inside every generation's budget (v7x: 64 MiB physical per TC).
    per_lane_bytes = 4 * (2 * 128 + 2 * 128 + 2 * 8 + 4 * 128)   # ~4.1 KiB / lane
    max_bt = max(128, ((40 * 1024 * 1024) // per_lane_bytes) // 128 * 128)
    bt = min(bt, max_bt)
    grid = -(-B // bt)                  # partial last block is masked by Pallas

    x = x.astype(jnp.float32)

    def w_in(w):                        # GEMM operands -> bf16 (f32 accumulation)
        return w.astype(jnp.bfloat16)

    def packed(b, sc, sh):              # (out, 3) packed [bias, bn_scale, bn_shift]
        return jnp.stack([b, sc, sh], axis=1).astype(jnp.float32)

    def col_vec(v):                     # (out, 1) bias column
        return v.astype(jnp.float32).reshape(-1, 1)

    flat = [x, gates]
    for (w, b, sc, sh) in params["enc"]:
        flat += [w_in(w), packed(b, sc, sh)]
    zw, zb = params["z"]
    flat += [w_in(zw), col_vec(zb)]
    for (w, b, sc, sh) in params["dec"]:
        flat += [w_in(w), packed(b, sc, sh)]
    xw, xb = params["xbar"]
    flat += [w_in(xw), col_vec(xb)]

    def resident(a):                    # full-array block, constant index_map
        return pl.BlockSpec(a.shape, lambda i: (0, 0))

    in_specs = [pl.BlockSpec((bt, F), lambda i: (i, 0))]
    in_specs += [resident(a) for a in flat[1:]]

    out_specs = (
        pl.BlockSpec((bt, F), lambda i: (i, 0)),            # x_bar, row-major
        pl.BlockSpec((latent_dim, bt), lambda i: (0, i)),   # z, feature-major
    )
    out_shape = (
        jax.ShapeDtypeStruct((B, F), jnp.float32),
        jax.ShapeDtypeStruct((latent_dim, B), jnp.float32),
    )

    kernel = make_dense_ae_kernel(len(params["enc"]), len(params["dec"]))

    x_bar, z_fm = pl.pallas_call(
        kernel,
        out_shape=out_shape,
        grid_spec=pltpu.PrefetchScalarGridSpec(
            num_scalar_prefetch=0,
            grid=(grid,),
            in_specs=in_specs,
            out_specs=out_specs,
        ),
        compiler_params=pltpu.CompilerParams(
            dimension_semantics=("parallel",),     # shards grid steps on v7x's 2 TCs
            vmem_limit_bytes=48 * 1024 * 1024,     # < 64 MiB (v7x), > 16 MiB (v5e default)
        ),
    )(*flat)

    # z is tiny (latent_dim x B); transposing it in the wrapper costs ~nothing.
    return x_bar, 1, z_fm.T


# ---------------------------------------------------------------------------
# Pure-JAX reference (mirrors the PyTorch forward, same bf16 GEMM operands).
# ---------------------------------------------------------------------------
def dense_ae_reference(x, params, input_shape):
    if input_shape == 124:
        feats = "E,pt,eta,phi".split(",")
    else:
        feats = "N,pt,eta,phi".split(",")
    i_eta, i_phi = feats.index("eta"), feats.index("phi")

    def lin(h, w, b):
        return jnp.dot(h.astype(jnp.bfloat16), w.astype(jnp.bfloat16).T,
                       preferred_element_type=jnp.float32) + b[None, :]

    def leaky(v):
        return jnp.where(v >= 0.0, v, NEG_SLOPE * v)

    mask = (x != 0.0).astype(jnp.float32)
    h = x.astype(jnp.float32)
    for (w, b, sc, sh) in params["enc"]:
        h = leaky(lin(h, w, b))                          # after Linear
        h = leaky(leaky(h * sc[None, :] + sh[None, :]))  # after BN, after Dropout
    zw, zb = params["z"]
    z = lin(h, zw, zb)
    d = z
    for (w, b, sc, sh) in params["dec"]:
        d = leaky(lin(d, w, b))
        d = leaky(leaky(d * sc[None, :] + sh[None, :]))
    xw, xb = params["xbar"]
    rec = lin(d, xw, xb)
    col = jnp.arange(rec.shape[1])[None, :] % 4
    th = jnp.tanh(rec)
    x_bar = jnp.where(col == i_eta, 4.0 * th,
                      jnp.where(col == i_phi, PI * th, jnp.maximum(rec, 0.0)))
    return mask * x_bar, z


if __name__ == "__main__":
    key = jax.random.PRNGKey(0)

    def run_case(input_shape, hidden_channels, latent_dim, batch, b_tile, case_key):
        k_par, k_x, k_zero = jax.random.split(case_key, 3)
        params = init_dense_ae_params(k_par, input_shape, hidden_channels, latent_dim)

        x = jax.random.normal(k_x, (batch, input_shape), jnp.float32)
        # inject exact zeros so the nonzero-mask in the forward is exercised
        keep = jax.random.bernoulli(k_zero, 0.7, (batch, input_shape))
        x = x * keep.astype(jnp.float32)

        x_bar, one, z = dense_ae_forward(x, params, input_shape, latent_dim,
                                         b_tile=b_tile)
        jax.block_until_ready((x_bar, z))

        x_bar_ref, z_ref = dense_ae_reference(x, params, input_shape)
        assert one == 1
        assert x_bar.shape == (batch, input_shape)
        assert z.shape == (batch, latent_dim)
        # Kernel and reference run the same bf16-operand GEMMs with f32
        # accumulation; tolerance covers accumulation-order / re-rounding
        # differences between the Mosaic kernel and the XLA reference.
        assert jnp.allclose(x_bar, x_bar_ref, atol=2e-2, rtol=2e-2), "x_bar mismatch"
        assert jnp.allclose(z, z_ref, atol=2e-2, rtol=2e-2), "z mismatch"

    k1, k2 = jax.random.split(key)
    # Multi-tile grid, batch NOT a multiple of 128 -> exercises the partial
    # (masked) last block and the multi-step index_map path.
    run_case(12, [32, 16], 4, batch=777, b_tile=256, case_key=k1)
    # Wide-feature configuration, 2 grid steps (both v7x TensorCores fed),
    # partial tail block again.
    run_case(124, [64, 32], 8, batch=200, b_tile=128, case_key=k2)

    print("KERNEL_OK")
</pallas_src>

<mosaic_0001>
module attributes {stable_mosaic.version = 11 : i64} {
  func.func @kernel(%arg0: i32, %arg1: memref<256x12xf32, #tpu.memory_space<vmem>>, %arg2: memref<12x2xf32, #tpu.memory_space<vmem>>, %arg3: memref<32x12xbf16, #tpu.memory_space<vmem>>, %arg4: memref<32x3xf32, #tpu.memory_space<vmem>>, %arg5: memref<16x32xbf16, #tpu.memory_space<vmem>>, %arg6: memref<16x3xf32, #tpu.memory_space<vmem>>, %arg7: memref<4x16xbf16, #tpu.memory_space<vmem>>, %arg8: memref<4x1xf32, #tpu.memory_space<vmem>>, %arg9: memref<16x4xbf16, #tpu.memory_space<vmem>>, %arg10: memref<16x3xf32, #tpu.memory_space<vmem>>, %arg11: memref<32x16xbf16, #tpu.memory_space<vmem>>, %arg12: memref<32x3xf32, #tpu.memory_space<vmem>>, %arg13: memref<12x32xbf16, #tpu.memory_space<vmem>>, %arg14: memref<12x1xf32, #tpu.memory_space<vmem>>, %arg15: memref<256x12xf32, #tpu.memory_space<vmem>>, %arg16: memref<4x256xf32, #tpu.memory_space<vmem>>) attributes {dimension_semantics = [#tpu.dimension_semantics<parallel>], iteration_bounds = array<i64: 4>, scalar_prefetch = 0 : i64, scratch_operands = 0 : i64, tpu.core_type = #tpu.core_type<tc>, window_params = [{transform_indices = @transform_0, window_bounds = array<i64: 256, 12>}, {pipeline_mode = #tpu.pipeline_mode<synchronous>, transform_indices = @transform_1, window_bounds = array<i64: 12, 2>}, {pipeline_mode = #tpu.pipeline_mode<synchronous>, transform_indices = @transform_2, window_bounds = array<i64: 32, 12>}, {pipeline_mode = #tpu.pipeline_mode<synchronous>, transform_indices = @transform_3, window_bounds = array<i64: 32, 3>}, {pipeline_mode = #tpu.pipeline_mode<synchronous>, transform_indices = @transform_4, window_bounds = array<i64: 16, 32>}, {pipeline_mode = #tpu.pipeline_mode<synchronous>, transform_indices = @transform_5, window_bounds = array<i64: 16, 3>}, {pipeline_mode = #tpu.pipeline_mode<synchronous>, transform_indices = @transform_6, window_bounds = array<i64: 4, 16>}, {pipeline_mode = #tpu.pipeline_mode<synchronous>, transform_indices = @transform_7, window_bounds = array<i64: 4, 1>}, {pipeline_mode = #tpu.pipeline_mode<synchronous>, transform_indices = @transform_8, window_bounds = array<i64: 16, 4>}, {pipeline_mode = #tpu.pipeline_mode<synchronous>, transform_indices = @transform_9, window_bounds = array<i64: 16, 3>}, {pipeline_mode = #tpu.pipeline_mode<synchronous>, transform_indices = @transform_10, window_bounds = array<i64: 32, 16>}, {pipeline_mode = #tpu.pipeline_mode<synchronous>, transform_indices = @transform_11, window_bounds = array<i64: 32, 3>}, {pipeline_mode = #tpu.pipeline_mode<synchronous>, transform_indices = @transform_12, window_bounds = array<i64: 12, 32>}, {pipeline_mode = #tpu.pipeline_mode<synchronous>, transform_indices = @transform_13, window_bounds = array<i64: 12, 1>}, {transform_indices = @transform_14, window_bounds = array<i64: 256, 12>}, {transform_indices = @transform_15, window_bounds = array<i64: 4, 256>}]} {
    %c0 = arith.constant 0 : index
    %c0_0 = arith.constant 0 : index
    %0 = vector.load %arg3[%c0, %c0_0] : memref<32x12xbf16, #tpu.memory_space<vmem>>, vector<32x12xbf16>
    %c0_1 = arith.constant 0 : index
    %c0_2 = arith.constant 0 : index
    %1 = vector.load %arg1[%c0_1, %c0_2] : memref<256x12xf32, #tpu.memory_space<vmem>>, vector<256x12xf32>
    %2 = arith.truncf %1 : vector<256x12xf32> to vector<256x12xbf16>
    %cst = arith.constant dense<0.000000e+00> : vector<32x256xf32>
    %3 = tpu.matmul %0, %2, %cst {dimension_numbers = #tpu.dot_dimension_numbers<[1], [1], [0], [0], [0, 0, 1, 0], [], []>} : vector<32x12xbf16>, vector<256x12xbf16>, vector<32x256xf32> -> vector<32x256xf32>
    %c0_3 = arith.constant 0 : index
    %c0_4 = arith.constant 0 : index
    %4 = vector.load %arg4[%c0_3, %c0_4] : memref<32x3xf32, #tpu.memory_space<vmem>>, vector<32x3xf32>
    %5 = vector.extract_strided_slice %4 {offsets = [0, 0], sizes = [32, 1], strides = [1, 1]} : vector<32x3xf32> to vector<32x1xf32>
    %6 = vector.extract_strided_slice %4 {offsets = [0, 1], sizes = [32, 1], strides = [1, 1]} : vector<32x3xf32> to vector<32x1xf32>
    %7 = vector.extract_strided_slice %4 {offsets = [0, 2], sizes = [32, 1], strides = [1, 1]} : vector<32x3xf32> to vector<32x1xf32>
    %8 = vector.broadcast %5 : vector<32x1xf32> to vector<32x256xf32>
    %9 = arith.addf %3, %8 : vector<32x256xf32>
    %cst_5 = arith.constant 5.000000e-01 : f32
    %10 = vector.broadcast %cst_5 : f32 to vector<32x256xf32>
    %11 = arith.mulf %10, %9 : vector<32x256xf32>
    %12 = arith.maximumf %9, %11 : vector<32x256xf32>
    %13 = vector.broadcast %6 : vector<32x1xf32> to vector<32x256xf32>
    %14 = arith.mulf %12, %13 : vector<32x256xf32>
    %15 = vector.broadcast %7 : vector<32x1xf32> to vector<32x256xf32>
    %16 = arith.addf %14, %15 : vector<32x256xf32>
    %cst_6 = arith.constant 2.500000e-01 : f32
    %17 = vector.broadcast %cst_6 : f32 to vector<32x256xf32>
    %18 = arith.mulf %17, %16 : vector<32x256xf32>
    %19 = arith.maximumf %16, %18 : vector<32x256xf32>
    %c0_7 = arith.constant 0 : index
    %c0_8 = arith.constant 0 : index
    %20 = vector.load %arg5[%c0_7, %c0_8] : memref<16x32xbf16, #tpu.memory_space<vmem>>, vector<16x32xbf16>
    %21 = arith.truncf %19 : vector<32x256xf32> to vector<32x256xbf16>
    %cst_9 = arith.constant dense<0.000000e+00> : vector<16x256xf32>
    %22 = tpu.matmul %20, %21, %cst_9 {dimension_numbers = #tpu.dot_dimension_numbers<[1], [0], [0], [1], [0, 0, 1, 1], [], []>} : vector<16x32xbf16>, vector<32x256xbf16>, vector<16x256xf32> -> vector<16x256xf32>
    %c0_10 = arith.constant 0 : index
    %c0_11 = arith.constant 0 : index
    %23 = vector.load %arg6[%c0_10, %c0_11] : memref<16x3xf32, #tpu.memory_space<vmem>>, vector<16x3xf32>
    %24 = vector.extract_strided_slice %23 {offsets = [0, 0], sizes = [16, 1], strides = [1, 1]} : vector<16x3xf32> to vector<16x1xf32>
    %25 = vector.extract_strided_slice %23 {offsets = [0, 1], sizes = [16, 1], strides = [1, 1]} : vector<16x3xf32> to vector<16x1xf32>
    %26 = vector.extract_strided_slice %23 {offsets = [0, 2], sizes = [16, 1], strides = [1, 1]} : vector<16x3xf32> to vector<16x1xf32>
    %27 = vector.broadcast %24 : vector<16x1xf32> to vector<16x256xf32>
    %28 = arith.addf %22, %27 : vector<16x256xf32>
    %cst_12 = arith.constant 5.000000e-01 : f32
    %29 = vector.broadcast %cst_12 : f32 to vector<16x256xf32>
    %30 = arith.mulf %29, %28 : vector<16x256xf32>
    %31 = arith.maximumf %28, %30 : vector<16x256xf32>
    %32 = vector.broadcast %25 : vector<16x1xf32> to vector<16x256xf32>
    %33 = arith.mulf %31, %32 : vector<16x256xf32>
    %34 = vector.broadcast %26 : vector<16x1xf32> to vector<16x256xf32>
    %35 = arith.addf %33, %34 : vector<16x256xf32>
    %cst_13 = arith.constant 2.500000e-01 : f32
    %36 = vector.broadcast %cst_13 : f32 to vector<16x256xf32>
    %37 = arith.mulf %36, %35 : vector<16x256xf32>
    %38 = arith.maximumf %35, %37 : vector<16x256xf32>
    %c0_14 = arith.constant 0 : index
    %c0_15 = arith.constant 0 : index
    %39 = vector.load %arg7[%c0_14, %c0_15] : memref<4x16xbf16, #tpu.memory_space<vmem>>, vector<4x16xbf16>
    %40 = arith.truncf %38 : vector<16x256xf32> to vector<16x256xbf16>
    %cst_16 = arith.constant dense<0.000000e+00> : vector<4x256xf32>
    %41 = tpu.matmul %39, %40, %cst_16 {dimension_numbers = #tpu.dot_dimension_numbers<[1], [0], [0], [1], [0, 0, 1, 1], [], []>} : vector<4x16xbf16>, vector<16x256xbf16>, vector<4x256xf32> -> vector<4x256xf32>
    %c0_17 = arith.constant 0 : index
    %c0_18 = arith.constant 0 : index
    %42 = vector.load %arg8[%c0_17, %c0_18] : memref<4x1xf32, #tpu.memory_space<vmem>>, vector<4x1xf32>
    %43 = vector.broadcast %42 : vector<4x1xf32> to vector<4x256xf32>
    %44 = arith.addf %41, %43 : vector<4x256xf32>
    %c0_19 = arith.constant 0 : index
    %c0_20 = arith.constant 0 : index
    %45 = vector.load %arg9[%c0_19, %c0_20] : memref<16x4xbf16, #tpu.memory_space<vmem>>, vector<16x4xbf16>
    %46 = arith.truncf %44 : vector<4x256xf32> to vector<4x256xbf16>
    %cst_21 = arith.constant dense<0.000000e+00> : vector<16x256xf32>
    %47 = tpu.matmul %45, %46, %cst_21 {dimension_numbers = #tpu.dot_dimension_numbers<[1], [0], [0], [1], [0, 0, 1, 1], [], []>} : vector<16x4xbf16>, vector<4x256xbf16>, vector<16x256xf32> -> vector<16x256xf32>
    %c0_22 = arith.constant 0 : index
    %c0_23 = arith.constant 0 : index
    %48 = vector.load %arg10[%c0_22, %c0_23] : memref<16x3xf32, #tpu.memory_space<vmem>>, vector<16x3xf32>
    %49 = vector.extract_strided_slice %48 {offsets = [0, 0], sizes = [16, 1], strides = [1, 1]} : vector<16x3xf32> to vector<16x1xf32>
    %50 = vector.extract_strided_slice %48 {offsets = [0, 1], sizes = [16, 1], strides = [1, 1]} : vector<16x3xf32> to vector<16x1xf32>
    %51 = vector.extract_strided_slice %48 {offsets = [0, 2], sizes = [16, 1], strides = [1, 1]} : vector<16x3xf32> to vector<16x1xf32>
    %52 = vector.broadcast %49 : vector<16x1xf32> to vector<16x256xf32>
    %53 = arith.addf %47, %52 : vector<16x256xf32>
    %cst_24 = arith.constant 5.000000e-01 : f32
    %54 = vector.broadcast %cst_24 : f32 to vector<16x256xf32>
    %55 = arith.mulf %54, %53 : vector<16x256xf32>
    %56 = arith.maximumf %53, %55 : vector<16x256xf32>
    %57 = vector.broadcast %50 : vector<16x1xf32> to vector<16x256xf32>
    %58 = arith.mulf %56, %57 : vector<16x256xf32>
    %59 = vector.broadcast %51 : vector<16x1xf32> to vector<16x256xf32>
    %60 = arith.addf %58, %59 : vector<16x256xf32>
    %cst_25 = arith.constant 2.500000e-01 : f32
    %61 = vector.broadcast %cst_25 : f32 to vector<16x256xf32>
    %62 = arith.mulf %61, %60 : vector<16x256xf32>
    %63 = arith.maximumf %60, %62 : vector<16x256xf32>
    %c0_26 = arith.constant 0 : index
    %c0_27 = arith.constant 0 : index
    %64 = vector.load %arg11[%c0_26, %c0_27] : memref<32x16xbf16, #tpu.memory_space<vmem>>, vector<32x16xbf16>
    %65 = arith.truncf %63 : vector<16x256xf32> to vector<16x256xbf16>
    %cst_28 = arith.constant dense<0.000000e+00> : vector<32x256xf32>
    %66 = tpu.matmul %64, %65, %cst_28 {dimension_numbers = #tpu.dot_dimension_numbers<[1], [0], [0], [1], [0, 0, 1, 1], [], []>} : vector<32x16xbf16>, vector<16x256xbf16>, vector<32x256xf32> -> vector<32x256xf32>
    %c0_29 = arith.constant 0 : index
    %c0_30 = arith.constant 0 : index
    %67 = vector.load %arg12[%c0_29, %c0_30] : memref<32x3xf32, #tpu.memory_space<vmem>>, vector<32x3xf32>
    %68 = vector.extract_strided_slice %67 {offsets = [0, 0], sizes = [32, 1], strides = [1, 1]} : vector<32x3xf32> to vector<32x1xf32>
    %69 = vector.extract_strided_slice %67 {offsets = [0, 1], sizes = [32, 1], strides = [1, 1]} : vector<32x3xf32> to vector<32x1xf32>
    %70 = vector.extract_strided_slice %67 {offsets = [0, 2], sizes = [32, 1], strides = [1, 1]} : vector<32x3xf32> to vector<32x1xf32>
    %71 = vector.broadcast %68 : vector<32x1xf32> to vector<32x256xf32>
    %72 = arith.addf %66, %71 : vector<32x256xf32>
    %cst_31 = arith.constant 5.000000e-01 : f32
    %73 = vector.broadcast %cst_31 : f32 to vector<32x256xf32>
    %74 = arith.mulf %73, %72 : vector<32x256xf32>
    %75 = arith.maximumf %72, %74 : vector<32x256xf32>
    %76 = vector.broadcast %69 : vector<32x1xf32> to vector<32x256xf32>
    %77 = arith.mulf %75, %76 : vector<32x256xf32>
    %78 = vector.broadcast %70 : vector<32x1xf32> to vector<32x256xf32>
    %79 = arith.addf %77, %78 : vector<32x256xf32>
    %cst_32 = arith.constant 2.500000e-01 : f32
    %80 = vector.broadcast %cst_32 : f32 to vector<32x256xf32>
    %81 = arith.mulf %80, %79 : vector<32x256xf32>
    %82 = arith.maximumf %79, %81 : vector<32x256xf32>
    %c0_33 = arith.constant 0 : index
    %c0_34 = arith.constant 0 : index
    %83 = vector.load %arg13[%c0_33, %c0_34] : memref<12x32xbf16, #tpu.memory_space<vmem>>, vector<12x32xbf16>
    %84 = arith.truncf %82 : vector<32x256xf32> to vector<32x256xbf16>
    %cst_35 = arith.constant dense<0.000000e+00> : vector<12x256xf32>
    %85 = tpu.matmul %83, %84, %cst_35 {dimension_numbers = #tpu.dot_dimension_numbers<[1], [0], [0], [1], [0, 0, 1, 1], [], []>} : vector<12x32xbf16>, vector<32x256xbf16>, vector<12x256xf32> -> vector<12x256xf32>
    %c0_36 = arith.constant 0 : index
    %c0_37 = arith.constant 0 : index
    %86 = vector.load %arg14[%c0_36, %c0_37] : memref<12x1xf32, #tpu.memory_space<vmem>>, vector<12x1xf32>
    %87 = vector.broadcast %86 : vector<12x1xf32> to vector<12x256xf32>
    %88 = arith.addf %85, %87 : vector<12x256xf32>
    %c0_38 = arith.constant 0 : index
    %c0_39 = arith.constant 0 : index
    %89 = vector.load %arg2[%c0_38, %c0_39] : memref<12x2xf32, #tpu.memory_space<vmem>>, vector<12x2xf32>
    %90 = vector.extract_strided_slice %89 {offsets = [0, 0], sizes = [12, 1], strides = [1, 1]} : vector<12x2xf32> to vector<12x1xf32>
    %91 = vector.extract_strided_slice %89 {offsets = [0, 1], sizes = [12, 1], strides = [1, 1]} : vector<12x2xf32> to vector<12x1xf32>
    %cst_40 = arith.constant 0.000000e+00 : f32
    %92 = vector.broadcast %cst_40 : f32 to vector<12x1xf32>
    %93 = arith.cmpf ogt, %91, %92 : vector<12x1xf32>
    %cst_41 = arith.constant 0.000000e+00 : f32
    %94 = vector.broadcast %cst_41 : f32 to vector<12x256xf32>
    %95 = arith.maximumf %88, %94 : vector<12x256xf32>
    %96 = math.tanh %88 : vector<12x256xf32>
    %97 = vector.broadcast %90 : vector<12x1xf32> to vector<12x256xf32>
    %98 = arith.mulf %97, %96 : vector<12x256xf32>
    %99 = vector.shape_cast %93 : vector<12x1xi1> to vector<12x1xi1>
    %100 = vector.broadcast %99 : vector<12x1xi1> to vector<12x256xi1>
    %101 = arith.select %100, %95, %98 : vector<12x256xi1>, vector<12x256xf32>
    %102 = tpu.transpose %101, [1, 0] : vector<12x256xf32> -> vector<256x12xf32>
    %c0_42 = arith.constant 0 : index
    %c0_43 = arith.constant 0 : index
    %103 = vector.load %arg1[%c0_42, %c0_43] : memref<256x12xf32, #tpu.memory_space<vmem>>, vector<256x12xf32>
    %cst_44 = arith.constant 0.000000e+00 : f32
    %104 = vector.broadcast %cst_44 : f32 to vector<256x12xf32>
    %105 = arith.cmpf one, %103, %104 : vector<256x12xf32>
    %cst_45 = arith.constant 0.000000e+00 : f32
    %106 = vector.broadcast %cst_45 : f32 to vector<256x12xf32>
    %107 = arith.select %105, %102, %106 : vector<256x12xi1>, vector<256x12xf32>
    %c0_46 = arith.constant 0 : index
    %c0_47 = arith.constant 0 : index
    %108 = vector.load %arg15[%c0_46, %c0_47] : memref<256x12xf32, #tpu.memory_space<vmem>>, vector<256x12xf32>
    tpu.vector_store %arg15[%c0_46, %c0_47], %107 {strides = array<i32>} : memref<256x12xf32, #tpu.memory_space<vmem>>, vector<256x12xf32>,
    %c0_48 = arith.constant 0 : index
    %c0_49 = arith.constant 0 : index
    %109 = vector.load %arg16[%c0_48, %c0_49] : memref<4x256xf32, #tpu.memory_space<vmem>>, vector<4x256xf32>
    tpu.vector_store %arg16[%c0_48, %c0_49], %44 {strides = array<i32>} : memref<4x256xf32, #tpu.memory_space<vmem>>, vector<4x256xf32>,
    return
  }
  func.func @transform_0(%arg0: i32) -> (i32, i32) {
    %c0_i32 = arith.constant 0 : i32
    %c0_i32_0 = arith.constant 0 : i32
    return %arg0, %c0_i32 : i32, i32
  }
  func.func @transform_1(%arg0: i32) -> (i32, i32) {
    %c0_i32 = arith.constant 0 : i32
    %c0_i32_0 = arith.constant 0 : i32
    %c0_i32_1 = arith.constant 0 : i32
    return %c0_i32, %c0_i32_0 : i32, i32
  }
  func.func @transform_2(%arg0: i32) -> (i32, i32) {
    %c0_i32 = arith.constant 0 : i32
    %c0_i32_0 = arith.constant 0 : i32
    %c0_i32_1 = arith.constant 0 : i32
    return %c0_i32, %c0_i32_0 : i32, i32
  }
  func.func @transform_3(%arg0: i32) -> (i32, i32) {
    %c0_i32 = arith.constant 0 : i32
    %c0_i32_0 = arith.constant 0 : i32
    %c0_i32_1 = arith.constant 0 : i32
    return %c0_i32, %c0_i32_0 : i32, i32
  }
  func.func @transform_4(%arg0: i32) -> (i32, i32) {
    %c0_i32 = arith.constant 0 : i32
    %c0_i32_0 = arith.constant 0 : i32
    %c0_i32_1 = arith.constant 0 : i32
    return %c0_i32, %c0_i32_0 : i32, i32
  }
  func.func @transform_5(%arg0: i32) -> (i32, i32) {
    %c0_i32 = arith.constant 0 : i32
    %c0_i32_0 = arith.constant 0 : i32
    %c0_i32_1 = arith.constant 0 : i32
    return %c0_i32, %c0_i32_0 : i32, i32
  }
  func.func @transform_6(%arg0: i32) -> (i32, i32) {
    %c0_i32 = arith.constant 0 : i32
    %c0_i32_0 = arith.constant 0 : i32
    %c0_i32_1 = arith.constant 0 : i32
    return %c0_i32, %c0_i32_0 : i32, i32
  }
  func.func @transform_7(%arg0: i32) -> (i32, i32) {
    %c0_i32 = arith.constant 0 : i32
    %c0_i32_0 = arith.constant 0 : i32
    %c0_i32_1 = arith.constant 0 : i32
    return %c0_i32, %c0_i32_0 : i32, i32
  }
  func.func @transform_8(%arg0: i32) -> (i32, i32) {
    %c0_i32 = arith.constant 0 : i32
    %c0_i32_0 = arith.constant 0 : i32
    %c0_i32_1 = arith.constant 0 : i32
    return %c0_i32, %c0_i32_0 : i32, i32
  }
  func.func @transform_9(%arg0: i32) -> (i32, i32) {
    %c0_i32 = arith.constant 0 : i32
    %c0_i32_0 = arith.constant 0 : i32
    %c0_i32_1 = arith.constant 0 : i32
    return %c0_i32, %c0_i32_0 : i32, i32
  }
  func.func @transform_10(%arg0: i32) -> (i32, i32) {
    %c0_i32 = arith.constant 0 : i32
    %c0_i32_0 = arith.constant 0 : i32
    %c0_i32_1 = arith.constant 0 : i32
    return %c0_i32, %c0_i32_0 : i32, i32
  }
  func.func @transform_11(%arg0: i32) -> (i32, i32) {
    %c0_i32 = arith.constant 0 : i32
    %c0_i32_0 = arith.constant 0 : i32
    %c0_i32_1 = arith.constant 0 : i32
    return %c0_i32, %c0_i32_0 : i32, i32
  }
  func.func @transform_12(%arg0: i32) -> (i32, i32) {
    %c0_i32 = arith.constant 0 : i32
    %c0_i32_0 = arith.constant 0 : i32
    %c0_i32_1 = arith.constant 0 : i32
    return %c0_i32, %c0_i32_0 : i32, i32
  }
  func.func @transform_13(%arg0: i32) -> (i32, i32) {
    %c0_i32 = arith.constant 0 : i32
    %c0_i32_0 = arith.constant 0 : i32
    %c0_i32_1 = arith.constant 0 : i32
    return %c0_i32, %c0_i32_0 : i32, i32
  }
  func.func @transform_14(%arg0: i32) -> (i32, i32) {
    %c0_i32 = arith.constant 0 : i32
    %c0_i32_0 = arith.constant 0 : i32
    return %arg0, %c0_i32 : i32, i32
  }
  func.func @transform_15(%arg0: i32) -> (i32, i32) {
    %c0_i32 = arith.constant 0 : i32
    %c0_i32_0 = arith.constant 0 : i32
    return %c0_i32, %arg0 : i32, i32
  }
}

</mosaic_0001>

<llo_original>
// kernel: tpu_custom_call.1
$region0: #{tpu_custom_call.1}
  #allocation0 [shape = 'u32[]', space=smem, size = 0x4, offset = 0x4, fixed_abs, tag = 'smem constant byte address 0x4 - core index']
  #allocation1 [shape = 'u32[144,128]{1,0:T(1,128)}', space=vmem, size = 0x12000, scoped, tag = 'internal scratch']
  %s0 = inlined_call_operand.vmem [shape: f32[777,12], index: 0, kind: input, shape index: {}]
  %s1 = inlined_call_operand.vmem [shape: f32[12,2], index: 1, kind: input, shape index: {}]
  %s2 = inlined_call_operand.vmem [shape: bf16[32,12], index: 2, kind: input, shape index: {}]
  %s3 = inlined_call_operand.vmem [shape: f32[32,3], index: 3, kind: input, shape index: {}]
  %s4 = inlined_call_operand.vmem [shape: bf16[16,32], index: 4, kind: input, shape index: {}]
  %s5 = inlined_call_operand.vmem [shape: f32[16,3], index: 5, kind: input, shape index: {}]
  %s6 = inlined_call_operand.vmem [shape: bf16[4,16], index: 6, kind: input, shape index: {}]
  %s7 = inlined_call_operand.vmem [shape: f32[4,1], index: 7, kind: input, shape index: {}]
  %s8 = inlined_call_operand.vmem [shape: bf16[16,4], index: 8, kind: input, shape index: {}]
  %s9 = inlined_call_operand.vmem [shape: f32[16,3], index: 9, kind: input, shape index: {}]
  %s10 = inlined_call_operand.vmem [shape: bf16[32,16], index: 10, kind: input, shape index: {}]
  %s11 = inlined_call_operand.vmem [shape: f32[32,3], index: 11, kind: input, shape index: {}]
  %s12 = inlined_call_operand.vmem [shape: bf16[12,32], index: 12, kind: input, shape index: {}]
  %s13 = inlined_call_operand.vmem [shape: f32[12,1], index: 13, kind: input, shape index: {}]
  %s14 = inlined_call_operand.vmem [shape: f32[777,12], index: 14, kind: output, shape index: {0}]
  %s15 = inlined_call_operand.hbm [shape: f32[4,777], index: 15, kind: output, shape index: {1}]
  %16 = xla_tuple %s14, %s15
  %s17 = sld [smem:[#allocation0]]
  $region145: #{tpu_custom_call.1} parent=0
    _
  %s19 = ssub.s32 1, %s17
  %s20 = scalar_select 0, %s19, %s17
  $region1: #{tpu_custom_call.1} parent=0
    #allocation2 [shape = 'u8[262144]{0}', space=vmem, size = 0x40000, scoped, tag = 'output window, operand 0']
    #allocation3 [shape = 'u8[8192]{0}', space=vmem, size = 0x2000, scoped, tag = 'output window, operand 1']
    #allocation4 [shape = 's32[2]{0}', space=sflag, size = 0x8, scoped, tag = 'scoped memory for tpu_custom_call.1']
    %21 = vsyncpa [#allocation4], 0
    %s22 = scalar_lea.sflag [#allocation4], 1
    %23 = vsyncpa %s22, 0
    loop: start=0, step=1, limit=6
    $region2: #{tpu_custom_call.1} parent=1 // loop_pre_header
      _
    $region3: #{tpu_custom_call.1} parent=1 // loop_header
      %s25 = sphi 0, %s29
      %p26 = scmp.ge.s32.totalorder %s25, 6
      %s35 = sphi 0, %s37
      %s38 = sphi 0, %s35
      %s39 = sphi 0, %s38
      %s55 = sphi 0, %s39
      %s59 = sphi 0, %s59
      %s61 = sphi 0, %s59
      %s62 = sphi 0, %s61
      %s76 = sphi 0, %s62
      %s80 = sphi 0, %s80
      %s82 = sphi 0, %s80
      %s83 = sphi 0, %s82
      %s97 = sphi 0, %s83
      %s101 = sphi 0, %s101
      %s103 = sphi 0, %s101
      %s104 = sphi 0, %s103
      %s118 = sphi 0, %s104
      %s122 = sphi 0, %s122
      %s124 = sphi 0, %s122
      %s125 = sphi 0, %s124
      %s139 = sphi 0, %s125
      %s143 = sphi 0, %s143
      %s145 = sphi 0, %s143
      %s146 = sphi 0, %s145
      %s160 = sphi 0, %s146
      %s164 = sphi 0, %s164
      %s166 = sphi 0, %s164
      %s167 = sphi 0, %s166
      %s181 = sphi 0, %s167
      %s185 = sphi 0, %s185
      %s187 = sphi 0, %s185
      %s188 = sphi 0, %s187
      %s202 = sphi 0, %s188
      %s206 = sphi 0, %s206
      %s208 = sphi 0, %s206
      %s209 = sphi 0, %s208
      %s223 = sphi 0, %s209
      %s227 = sphi 0, %s227
      %s229 = sphi 0, %s227
      %s230 = sphi 0, %s229
      %s244 = sphi 0, %s230
      %s248 = sphi 0, %s248
      %s250 = sphi 0, %s248
      %s251 = sphi 0, %s250
      %s265 = sphi 0, %s251
      %s269 = sphi 0, %s269
      %s271 = sphi 0, %s269
      %s272 = sphi 0, %s271
      %s286 = sphi 0, %s272
      %s290 = sphi 0, %s290
      %s292 = sphi 0, %s290
      %s293 = sphi 0, %s292
      %s307 = sphi 0, %s293
      %s311 = sphi 0, %s311
      %s313 = sphi 0, %s311
      %s314 = sphi 0, %s313
      %s328 = sphi 0, %s314
      %s334 = sphi 0, %s336
      %s337 = sphi 0, %s334
      %s338 = sphi 0, %s337
      %s354 = sphi 0, %s338
      %s360 = sphi 0, %s362
      %s363 = sphi 0, %s360
      %s364 = sphi 0, %s363
      %s380 = sphi 0, %s364
    $region4: #{tpu_custom_call.1} parent=1 // loop_header_branch
      %28 = sbr.rel (%p26) target = $region8
    $region5: #{tpu_custom_call.1} parent=1 // loop_body
      %s30 = ssub.s32 %s25, 1
      %s31 = ssub.s32 %s25, 2
      %s32 = sadd.s32 %s25, 1
      %s33 = ssub.s32 %s25, %s32
      %p34 = scmp.eq.s32.totalorder %s33, 0
      %s36 = sadd.s32 %s35, 1
      %s37 = scalar_select %p34, %s35, %s36
      %p40 = pneg %p34
      %p41 = scmp.eq.s32.totalorder %s25, 3
      %p42 = por %p40, %p41
      %p43 = scmp.ne.s32.totalorder %s35, %s38
      %p44 = scmp.eq.s32.totalorder %s25, 0
      %p45 = por %p43, %p44
      %p46 = scmp.ne.s32.totalorder %s35, %s38
      %p47 = scmp.eq.s32.totalorder %s30, 3
      %p48 = por %p46, %p47
      %p49 = scmp.ne.s32.totalorder %s38, %s39
      %p50 = scmp.eq.s32.totalorder %s30, 0
      %p51 = por %p49, %p50
      %p52 = scmp.ne.s32.totalorder %s38, %s39
      %p53 = scmp.eq.s32.totalorder %s31, 3
      %p54 = por %p52, %p53
      %p56 = scmp.ne.s32.totalorder %s39, %s55
      %p57 = scmp.eq.s32.totalorder %s31, 0
      %p58 = por %p56, %p57
      %s60 = sadd.s32 %s59, 1
      %p63 = scmp.eq.s32.totalorder %s25, 3
      %p64 = scmp.ne.s32.totalorder %s59, %s61
      %p65 = scmp.eq.s32.totalorder %s25, 0
      %p66 = por %p64, %p65
      %p67 = scmp.ne.s32.totalorder %s59, %s61
      %p68 = scmp.eq.s32.totalorder %s30, 3
      %p69 = por %p67, %p68
      %p70 = scmp.ne.s32.totalorder %s61, %s62
      %p71 = scmp.eq.s32.totalorder %s30, 0
      %p72 = por %p70, %p71
      %p73 = scmp.ne.s32.totalorder %s61, %s62
      %p74 = scmp.eq.s32.totalorder %s31, 3
      %p75 = por %p73, %p74
      %p77 = scmp.ne.s32.totalorder %s62, %s76
      %p78 = scmp.eq.s32.totalorder %s31, 0
      %p79 = por %p77, %p78
      %s81 = sadd.s32 %s80, 1
      %p84 = scmp.eq.s32.totalorder %s25, 3
      %p85 = scmp.ne.s32.totalorder %s80, %s82
      %p86 = scmp.eq.s32.totalorder %s25, 0
      %p87 = por %p85, %p86
      %p88 = scmp.ne.s32.totalorder %s80, %s82
      %p89 = scmp.eq.s32.totalorder %s30, 3
      %p90 = por %p88, %p89
      %p91 = scmp.ne.s32.totalorder %s82, %s83
      %p92 = scmp.eq.s32.totalorder %s30, 0
      %p93 = por %p91, %p92
      %p94 = scmp.ne.s32.totalorder %s82, %s83
      %p95 = scmp.eq.s32.totalorder %s31, 3
      %p96 = por %p94, %p95
      %p98 = scmp.ne.s32.totalorder %s83, %s97
      %p99 = scmp.eq.s32.totalorder %s31, 0
      %p100 = por %p98, %p99
      %s102 = sadd.s32 %s101, 1
      %p105 = scmp.eq.s32.totalorder %s25, 3
      %p106 = scmp.ne.s32.totalorder %s101, %s103
      %p107 = scmp.eq.s32.totalorder %s25, 0
      %p108 = por %p106, %p107
      %p109 = scmp.ne.s32.totalorder %s101, %s103
      %p110 = scmp.eq.s32.totalorder %s30, 3
      %p111 = por %p109, %p110
      %p112 = scmp.ne.s32.totalorder %s103, %s104
      %p113 = scmp.eq.s32.totalorder %s30, 0
      %p114 = por %p112, %p113
      %p115 = scmp.ne.s32.totalorder %s103, %s104
      %p116 = scmp.eq.s32.totalorder %s31, 3
      %p117 = por %p115, %p116
      %p119 = scmp.ne.s32.totalorder %s104, %s118
      %p120 = scmp.eq.s32.totalorder %s31, 0
      %p121 = por %p119, %p120
      %s123 = sadd.s32 %s122, 1
      %p126 = scmp.eq.s32.totalorder %s25, 3
      %p127 = scmp.ne.s32.totalorder %s122, %s124
      %p128 = scmp.eq.s32.totalorder %s25, 0
      %p129 = por %p127, %p128
      %p130 = scmp.ne.s32.totalorder %s122, %s124
      %p131 = scmp.eq.s32.totalorder %s30, 3
      %p132 = por %p130, %p131
      %p133 = scmp.ne.s32.totalorder %s124, %s125
      %p134 = scmp.eq.s32.totalorder %s30, 0
      %p135 = por %p133, %p134
      %p136 = scmp.ne.s32.totalorder %s124, %s125
      %p137 = scmp.eq.s32.totalorder %s31, 3
      %p138 = por %p136, %p137
      %p140 = scmp.ne.s32.totalorder %s125, %s139
      %p141 = scmp.eq.s32.totalorder %s31, 0
      %p142 = por %p140, %p141
      %s144 = sadd.s32 %s143, 1
      %p147 = scmp.eq.s32.totalorder %s25, 3
      %p148 = scmp.ne.s32.totalorder %s143, %s145
      %p149 = scmp.eq.s32.totalorder %s25, 0
      %p150 = por %p148, %p149
      %p151 = scmp.ne.s32.totalorder %s143, %s145
      %p152 = scmp.eq.s32.totalorder %s30, 3
      %p153 = por %p151, %p152
      %p154 = scmp.ne.s32.totalorder %s145, %s146
      %p155 = scmp.eq.s32.totalorder %s30, 0
      %p156 = por %p154, %p155
      %p157 = scmp.ne.s32.totalorder %s145, %s146
      %p158 = scmp.eq.s32.totalorder %s31, 3
      %p159 = por %p157, %p158
      %p161 = scmp.ne.s32.totalorder %s146, %s160
      %p162 = scmp.eq.s32.totalorder %s31, 0
      %p163 = por %p161, %p162
      %s165 = sadd.s32 %s164, 1
      %p168 = scmp.eq.s32.totalorder %s25, 3
      %p169 = scmp.ne.s32.totalorder %s164, %s166
      %p170 = scmp.eq.s32.totalorder %s25, 0
      %p171 = por %p169, %p170
      %p172 = scmp.ne.s32.totalorder %s164, %s166
      %p173 = scmp.eq.s32.totalorder %s30, 3
      %p174 = por %p172, %p173
      %p175 = scmp.ne.s32.totalorder %s166, %s167
      %p176 = scmp.eq.s32.totalorder %s30, 0
      %p177 = por %p175, %p176
      %p178 = scmp.ne.s32.totalorder %s166, %s167
      %p179 = scmp.eq.s32.totalorder %s31, 3
      %p180 = por %p178, %p179
      %p182 = scmp.ne.s32.totalorder %s167, %s181
      %p183 = scmp.eq.s32.totalorder %s31, 0
      %p184 = por %p182, %p183
      %s186 = sadd.s32 %s185, 1
      %p189 = scmp.eq.s32.totalorder %s25, 3
      %p190 = scmp.ne.s32.totalorder %s185, %s187
      %p191 = scmp.eq.s32.totalorder %s25, 0
      %p192 = por %p190, %p191
      %p193 = scmp.ne.s32.totalorder %s185, %s187
      %p194 = scmp.eq.s32.totalorder %s30, 3
      %p195 = por %p193, %p194
      %p196 = scmp.ne.s32.totalorder %s187, %s188
      %p197 = scmp.eq.s32.totalorder %s30, 0
      %p198 = por %p196, %p197
      %p199 = scmp.ne.s32.totalorder %s187, %s188
      %p200 = scmp.eq.s32.totalorder %s31, 3
      %p201 = por %p199, %p200
      %p203 = scmp.ne.s32.totalorder %s188, %s202
      %p204 = scmp.eq.s32.totalorder %s31, 0
      %p205 = por %p203, %p204
      %s207 = sadd.s32 %s206, 1
      %p210 = scmp.eq.s32.totalorder %s25, 3
      %p211 = scmp.ne.s32.totalorder %s206, %s208
      %p212 = scmp.eq.s32.totalorder %s25, 0
      %p213 = por %p211, %p212
      %p214 = scmp.ne.s32.totalorder %s206, %s208
      %p215 = scmp.eq.s32.totalorder %s30, 3
      %p216 = por %p214, %p215
      %p217 = scmp.ne.s32.totalorder %s208, %s209
      %p218 = scmp.eq.s32.totalorder %s30, 0
      %p219 = por %p217, %p218
      %p220 = scmp.ne.s32.totalorder %s208, %s209
      %p221 = scmp.eq.s32.totalorder %s31, 3
      %p222 = por %p220, %p221
      %p224 = scmp.ne.s32.totalorder %s209, %s223
      %p225 = scmp.eq.s32.totalorder %s31, 0
      %p226 = por %p224, %p225
      %s228 = sadd.s32 %s227, 1
      %p231 = scmp.eq.s32.totalorder %s25, 3
      %p232 = scmp.ne.s32.totalorder %s227, %s229
      %p233 = scmp.eq.s32.totalorder %s25, 0
      %p234 = por %p232, %p233
      %p235 = scmp.ne.s32.totalorder %s227, %s229
      %p236 = scmp.eq.s32.totalorder %s30, 3
      %p237 = por %p235, %p236
      %p238 = scmp.ne.s32.totalorder %s229, %s230
      %p239 = scmp.eq.s32.totalorder %s30, 0
      %p240 = por %p238, %p239
      %p241 = scmp.ne.s32.totalorder %s229, %s230
      %p242 = scmp.eq.s32.totalorder %s31, 3
      %p243 = por %p241, %p242
      %p245 = scmp.ne.s32.totalorder %s230, %s244
      %p246 = scmp.eq.s32.totalorder %s31, 0
      %p247 = por %p245, %p246
      %s249 = sadd.s32 %s248, 1
      %p252 = scmp.eq.s32.totalorder %s25, 3
      %p253 = scmp.ne.s32.totalorder %s248, %s250
      %p254 = scmp.eq.s32.totalorder %s25, 0
      %p255 = por %p253, %p254
      %p256 = scmp.ne.s32.totalorder %s248, %s250
      %p257 = scmp.eq.s32.totalorder %s30, 3
      %p258 = por %p256, %p257
      %p259 = scmp.ne.s32.totalorder %s250, %s251
      %p260 = scmp.eq.s32.totalorder %s30, 0
      %p261 = por %p259, %p260
      %p262 = scmp.ne.s32.totalorder %s250, %s251
      %p263 = scmp.eq.s32.totalorder %s31, 3
      %p264 = por %p262, %p263
      %p266 = scmp.ne.s32.totalorder %s251, %s265
      %p267 = scmp.eq.s32.totalorder %s31, 0
      %p268 = por %p266, %p267
      %s270 = sadd.s32 %s269, 1
      %p273 = scmp.eq.s32.totalorder %s25, 3
      %p274 = scmp.ne.s32.totalorder %s269, %s271
      %p275 = scmp.eq.s32.totalorder %s25, 0
      %p276 = por %p274, %p275
      %p277 = scmp.ne.s32.totalorder %s269, %s271
      %p278 = scmp.eq.s32.totalorder %s30, 3
      %p279 = por %p277, %p278
      %p280 = scmp.ne.s32.totalorder %s271, %s272
      %p281 = scmp.eq.s32.totalorder %s30, 0
      %p282 = por %p280, %p281
      %p283 = scmp.ne.s32.totalorder %s271, %s272
      %p284 = scmp.eq.s32.totalorder %s31, 3
      %p285 = por %p283, %p284
      %p287 = scmp.ne.s32.totalorder %s272, %s286
      %p288 = scmp.eq.s32.totalorder %s31, 0
      %p289 = por %p287, %p288
      %s291 = sadd.s32 %s290, 1
      %p294 = scmp.eq.s32.totalorder %s25, 3
      %p295 = scmp.ne.s32.totalorder %s290, %s292
      %p296 = scmp.eq.s32.totalorder %s25, 0
      %p297 = por %p295, %p296
      %p298 = scmp.ne.s32.totalorder %s290, %s292
      %p299 = scmp.eq.s32.totalorder %s30, 3
      %p300 = por %p298, %p299
      %p301 = scmp.ne.s32.totalorder %s292, %s293
      %p302 = scmp.eq.s32.totalorder %s30, 0
      %p303 = por %p301, %p302
      %p304 = scmp.ne.s32.totalorder %s292, %s293
      %p305 = scmp.eq.s32.totalorder %s31, 3
      %p306 = por %p304, %p305
      %p308 = scmp.ne.s32.totalorder %s293, %s307
      %p309 = scmp.eq.s32.totalorder %s31, 0
      %p310 = por %p308, %p309
      %s312 = sadd.s32 %s311, 1
      %p315 = scmp.eq.s32.totalorder %s25, 3
      %p316 = scmp.ne.s32.totalorder %s311, %s313
      %p317 = scmp.eq.s32.totalorder %s25, 0
      %p318 = por %p316, %p317
      %p319 = scmp.ne.s32.totalorder %s311, %s313
      %p320 = scmp.eq.s32.totalorder %s30, 3
      %p321 = por %p319, %p320
      %p322 = scmp.ne.s32.totalorder %s313, %s314
      %p323 = scmp.eq.s32.totalorder %s30, 0
      %p324 = por %p322, %p323
      %p325 = scmp.ne.s32.totalorder %s313, %s314
      %p326 = scmp.eq.s32.totalorder %s31, 3
      %p327 = por %p325, %p326
      %p329 = scmp.ne.s32.totalorder %s314, %s328
      %p330 = scmp.eq.s32.totalorder %s31, 0
      %p331 = por %p329, %p330
      %s332 = ssub.s32 %s25, %s32
      %p333 = scmp.eq.s32.totalorder %s332, 0
      %s335 = sadd.s32 %s334, 1
      %s336 = scalar_select %p333, %s334, %s335
      %p339 = pneg %p333
      %p340 = scmp.eq.s32.totalorder %s25, 3
      %p341 = por %p339, %p340
      %p342 = scmp.ne.s32.totalorder %s334, %s337
      %p343 = scmp.eq.s32.totalorder %s25, 0
      %p344 = por %p342, %p343
      %p345 = scmp.ne.s32.totalorder %s334, %s337
      %p346 = scmp.eq.s32.totalorder %s30, 3
      %p347 = por %p345, %p346
      %p348 = scmp.ne.s32.totalorder %s337, %s338
      %p349 = scmp.eq.s32.totalorder %s30, 0
      %p350 = por %p348, %p349
      %p351 = scmp.ne.s32.totalorder %s337, %s338
      %p352 = scmp.eq.s32.totalorder %s31, 3
      %p353 = por %p351, %p352
      %p355 = scmp.ne.s32.totalorder %s338, %s354
      %p356 = scmp.eq.s32.totalorder %s31, 0
      %p357 = por %p355, %p356
      %s358 = ssub.s32 %s25, %s32
      %p359 = scmp.eq.s32.totalorder %s358, 0
      %s361 = sadd.s32 %s360, 1
      %s362 = scalar_select %p359, %s360, %s361
      %p365 = pneg %p359
      %p366 = scmp.eq.s32.totalorder %s25, 3
      %p367 = por %p365, %p366
      %p368 = scmp.ne.s32.totalorder %s360, %s363
      %p369 = scmp.eq.s32.totalorder %s25, 0
      %p370 = por %p368, %p369
      %p371 = scmp.ne.s32.totalorder %s360, %s363
      %p372 = scmp.eq.s32.totalorder %s30, 3
      %p373 = por %p371, %p372
      %p374 = scmp.ne.s32.totalorder %s363, %s364
      %p375 = scmp.eq.s32.totalorder %s30, 0
      %p376 = por %p374, %p375
      %p377 = scmp.ne.s32.totalorder %s363, %s364
      %p378 = scmp.eq.s32.totalorder %s31, 3
      %p379 = por %p377, %p378
      %p381 = scmp.ne.s32.totalorder %s364, %s380
      %p382 = scmp.eq.s32.totalorder %s31, 0
      %p383 = por %p381, %p382
      %p384 = scmp.le.s32.totalorder 1, %s25
      %p385 = scmp.lt.s32.totalorder %s25, 5
      %p386 = pnand %p384, %p385
      %p387 = pneg %p386
      // Predicated region
      $region9: #{tpu_custom_call.1} parent=5 // pred_check
        _
      $region10: #{tpu_custom_call.1} parent=5 // pred_check_branch
        %389 = sbr.rel (%p386) target = $region12
      $region11: #{tpu_custom_call.1} parent=5 // pred_region
        %s390 = ssub.s32 %s25, 1
        // Predicated region
        $region13: #{tpu_custom_call.1} parent=11 // pred_check
          %p391 = pneg %p72
        $region14: #{tpu_custom_call.1} parent=11 // pred_check_branch
          %393 = sbr.rel (%p391) target = $region16
        $region15: #{tpu_custom_call.1} parent=11 // pred_region
          _
        $region16: #{tpu_custom_call.1} parent=11 // pred_fallthru
          _
        // Predicated region
        $region17: #{tpu_custom_call.1} parent=11 // pred_check
          %p394 = pneg %p93
        $region18: #{tpu_custom_call.1} parent=11 // pred_check_branch
          %396 = sbr.rel (%p394) target = $region20
        $region19: #{tpu_custom_call.1} parent=11 // pred_region
          _
        $region20: #{tpu_custom_call.1} parent=11 // pred_fallthru
          _
        // Predicated region
        $region21: #{tpu_custom_call.1} parent=11 // pred_check
          %p397 = pneg %p114
        $region22: #{tpu_custom_call.1} parent=11 // pred_check_branch
          %399 = sbr.rel (%p397) target = $region24
        $region23: #{tpu_custom_call.1} parent=11 // pred_region
          _
        $region24: #{tpu_custom_call.1} parent=11 // pred_fallthru
          _
        // Predicated region
        $region25: #{tpu_custom_call.1} parent=11 // pred_check
          %p400 = pneg %p135
        $region26: #{tpu_custom_call.1} parent=11 // pred_check_branch
          %402 = sbr.rel (%p400) target = $region28
        $region27: #{tpu_custom_call.1} parent=11 // pred_region
          _
        $region28: #{tpu_custom_call.1} parent=11 // pred_fallthru
          _
        // Predicated region
        $region29: #{tpu_custom_call.1} parent=11 // pred_check
          %p403 = pneg %p156
        $region30: #{tpu_custom_call.1} parent=11 // pred_check_branch
          %405 = sbr.rel (%p403) target = $region32
        $region31: #{tpu_custom_call.1} parent=11 // pred_region
          _
        $region32: #{tpu_custom_call.1} parent=11 // pred_fallthru
          _
        // Predicated region
        $region33: #{tpu_custom_call.1} parent=11 // pred_check
          %p406 = pneg %p177
        $region34: #{tpu_custom_call.1} parent=11 // pred_check_branch
          %408 = sbr.rel (%p406) target = $region36
        $region35: #{tpu_custom_call.1} parent=11 // pred_region
          _
        $region36: #{tpu_custom_call.1} parent=11 // pred_fallthru
          _
        // Predicated region
        $region37: #{tpu_custom_call.1} parent=11 // pred_check
          %p409 = pneg %p198
        $region38: #{tpu_custom_call.1} parent=11 // pred_check_branch
          %411 = sbr.rel (%p409) target = $region40
        $region39: #{tpu_custom_call.1} parent=11 // pred_region
          _
        $region40: #{tpu_custom_call.1} parent=11 // pred_fallthru
          _
        // Predicated region
        $region41: #{tpu_custom_call.1} parent=11 // pred_check
          %p412 = pneg %p219
        $region42: #{tpu_custom_call.1} parent=11 // pred_check_branch
          %414 = sbr.rel (%p412) target = $region44
        $region43: #{tpu_custom_call.1} parent=11 // pred_region
          _
        $region44: #{tpu_custom_call.1} parent=11 // pred_fallthru
          _
        // Predicated region
        $region45: #{tpu_custom_call.1} parent=11 // pred_check
          %p415 = pneg %p240
        $region46: #{tpu_custom_call.1} parent=11 // pred_check_branch
          %417 = sbr.rel (%p415) target = $region48
        $region47: #{tpu_custom_call.1} parent=11 // pred_region
          _
        $region48: #{tpu_custom_call.1} parent=11 // pred_fallthru
          _
        // Predicated region
        $region49: #{tpu_custom_call.1} parent=11 // pred_check
          %p418 = pneg %p261
        $region50: #{tpu_custom_call.1} parent=11 // pred_check_branch
          %420 = sbr.rel (%p418) target = $region52
        $region51: #{tpu_custom_call.1} parent=11 // pred_region
          _
        $region52: #{tpu_custom_call.1} parent=11 // pred_fallthru
          _
        // Predicated region
        $region53: #{tpu_custom_call.1} parent=11 // pred_check
          %p421 = pneg %p282
        $region54: #{tpu_custom_call.1} parent=11 // pred_check_branch
          %423 = sbr.rel (%p421) target = $region56
        $region55: #{tpu_custom_call.1} parent=11 // pred_region
          _
        $region56: #{tpu_custom_call.1} parent=11 // pred_fallthru
          _
        // Predicated region
        $region57: #{tpu_custom_call.1} parent=11 // pred_check
          %p424 = pneg %p303
        $region58: #{tpu_custom_call.1} parent=11 // pred_check_branch
          %426 = sbr.rel (%p424) target = $region60
        $region59: #{tpu_custom_call.1} parent=11 // pred_region
          _
        $region60: #{tpu_custom_call.1} parent=11 // pred_fallthru
          _
        // Predicated region
        $region61: #{tpu_custom_call.1} parent=11 // pred_check
          %p427 = pneg %p324
        $region62: #{tpu_custom_call.1} parent=11 // pred_check_branch
          %429 = sbr.rel (%p427) target = $region64
        $region63: #{tpu_custom_call.1} parent=11 // pred_region
          _
        $region64: #{tpu_custom_call.1} parent=11 // pred_fallthru
          _
      $region12: #{tpu_custom_call.1} parent=5 // pred_fallthru
        _
      %p430 = scmp.lt.s32.totalorder %s25, 4
      // Predicated region
      $region65: #{tpu_custom_call.1} parent=5 // pred_check
        %p431 = pneg %p430
      $region66: #{tpu_custom_call.1} parent=5 // pred_check_branch
        %433 = sbr.rel (%p431) target = $region68
      $region67: #{tpu_custom_call.1} parent=5 // pred_region
        // Predicated region
        $region69: #{tpu_custom_call.1} parent=67 // pred_check
          %p434 = pneg %p45
        $region70: #{tpu_custom_call.1} parent=67 // pred_check_branch
          %436 = sbr.rel (%p434) target = $region72
        $region71: #{tpu_custom_call.1} parent=67 // pred_region
          %s437 = smul.u32 32, %s25
          %s438 = ssub.s32 98, %s437
          %p439 = scmp.lt.s32.totalorder %s438, 32
          %s440 = scalar_select %p439, %s438, 32
          %s441 = smul.u32 128, %s440
          %p442 = scmp.lt.s32.totalorder %s437, 97
          %s443 = scalar_select %p442, %s437, 97
          %s444 = smul.addr %s443, 8
          %s445 = scalar_lea.vmem %s0, %s444
          %s446 = smul.u32 32, %s25
          %s447 = ssub.s32 98, %s446
          %p448 = scmp.lt.s32.totalorder %s447, 32
          %s449 = scalar_select %p448, %s447, 32
          %s450 = smul.u32 128, %s449
        $region72: #{tpu_custom_call.1} parent=67 // pred_fallthru
          _
      $region68: #{tpu_custom_call.1} parent=5 // pred_fallthru
        _
      %p451 = scmp.le.s32.totalorder 1, %s25
      %p452 = scmp.lt.s32.totalorder %s25, 5
      %p453 = pnand %p451, %p452
      %p454 = pneg %p453
      // Predicated region
      $region73: #{tpu_custom_call.1} parent=5 // pred_check
        _
      $region74: #{tpu_custom_call.1} parent=5 // pred_check_branch
        %456 = sbr.rel (%p453) target = $region76
      $region75: #{tpu_custom_call.1} parent=5 // pred_region
        %s457 = ssub.s32 %s25, 1
        %s458 = smul.u32 32, %s30
        %s459 = ssub.s32 98, %s458
        %p460 = scmp.lt.s32.totalorder %s459, 32
        %s461 = scalar_select %p460, %s459, 32
        %s462 = smul.u32 128, %s461
        %p463 = scmp.lt.s32.totalorder %s458, 97
        %s464 = scalar_select %p463, %s458, 97
        %s465 = smul.addr %s464, 8
        %s466 = scalar_lea.vmem %s0, %s465
        %p467 = pneg %p51
        %p468 = pneg %p48
        %p469 = pneg %p72
        %p470 = pneg %p69
        %p471 = pneg %p93
        %p472 = pneg %p90
        %p473 = pneg %p114
        %p474 = pneg %p111
        %p475 = pneg %p135
        %p476 = pneg %p132
        %p477 = pneg %p156
        %p478 = pneg %p153
        %p479 = pneg %p177
        %p480 = pneg %p174
        %p481 = pneg %p198
        %p482 = pneg %p195
        %p483 = pneg %p219
        %p484 = pneg %p216
        %p485 = pneg %p240
        %p486 = pneg %p237
        %p487 = pneg %p261
        %p488 = pneg %p258
        %p489 = pneg %p282
        %p490 = pneg %p279
        %p491 = pneg %p303
        %p492 = pneg %p300
        %p493 = pneg %p324
        %p494 = pneg %p321
        %p495 = pneg %p350
        %p496 = pneg %p347
        %s497 = sand.u32 %s337, 1
        %s498 = sand.u32 %s337, 1
        %s499 = smul.addr %s498, 256
        %s500 = scalar_lea.vmem [#allocation2], %s499
        %p501 = pneg %p376
        %p502 = pneg %p373
        %s503 = sand.u32 %s363, 1
        %s504 = scalar_lea.sflag [#allocation4], %s503
        %s505 = sand.u32 %s363, 1
        %s506 = smul.addr %s505, 8
        %s507 = scalar_lea.vmem [#allocation3], %s506
        %s508 = smul.u32 32, %s30
        %s509 = ssub.s32 98, %s508
        %p510 = scmp.lt.s32.totalorder %s509, 32
        %s511 = scalar_select %p510, %s509, 32
        %s512 = smul.u32 128, %s511
        %p513 = scmp.lt.s32.totalorder %s508, 97
        %s514 = scalar_select %p513, %s508, 97
        %s515 = smul.addr %s514, 8
        %s516 = scalar_lea.vmem %s0, %s515
        %s517 = smul.u32 32, %s30
        %s518 = ssub.s32 98, %s517
        %p519 = scmp.lt.s32.totalorder %s518, 32
        %s520 = scalar_select %p519, %s518, 32
        %s521 = smul.u32 128, %s520
        %s522 = smul.u32 32, %s30
        %s523 = ssub.s32 98, %s522
        %p524 = scmp.lt.s32.totalorder %s523, 32
        %s525 = scalar_select %p524, %s523, 32
        %s526 = smul.u32 128, %s525
        %s527 = smul.u32 2, %s30
        %s528 = ssub.s32 7, %s527
        %p529 = scmp.lt.s32.totalorder %s528, 2
        %s530 = scalar_select %p529, %s528, 2
        %s531 = smul.u32 64, %s530
        %v533 = vld [vmem:[%s2] sm:$0xf]
        %v534 = vld [vmem:[%s2 + $0x4] sm:$0xf]
        %v535 = vld [vmem:[%s2 + $0x8] sm:$0xf]
        %v536 = vld [vmem:[%s2 + $0xc] sm:$0xf]
        %v537 = vld [vmem:[%s516] sm:$0xff]
        %v538 = vld [vmem:[%s516 + $0x8] sm:$0xff]
        %v539 = vld [vmem:[%s516 + $0x10] sm:$0xff]
        %v540 = vld [vmem:[%s516 + $0x18] sm:$0xff]
        %v541 = vld [vmem:[%s516 + $0x20] sm:$0xff]
        %v542 = vld [vmem:[%s516 + $0x28] sm:$0xff]
        %v543 = vld [vmem:[%s516 + $0x30] sm:$0xff]
        %v544 = vld [vmem:[%s516 + $0x38] sm:$0xff]
        %v545 = vld [vmem:[%s516 + $0x40] sm:$0xff]
        %v546 = vld [vmem:[%s516 + $0x48] sm:$0xff]
        %v547 = vld [vmem:[%s516 + $0x50] sm:$0xff]
        %v548 = vld [vmem:[%s516 + $0x58] sm:$0xff]
        %v549 = vld [vmem:[%s516 + $0x60] sm:$0xff]
        %v550 = vld [vmem:[%s516 + $0x68] sm:$0xff]
        %v551 = vld [vmem:[%s516 + $0x70] sm:$0xff]
        %v552 = vld [vmem:[%s516 + $0x78] sm:$0xff]
        %v553 = vld [vmem:[%s516 + $0x80] sm:$0xff]
        %v554 = vld [vmem:[%s516 + $0x88] sm:$0xff]
        %v555 = vld [vmem:[%s516 + $0x90] sm:$0xff]
        %v556 = vld [vmem:[%s516 + $0x98] sm:$0xff]
        %v557 = vld [vmem:[%s516 + $0xa0] sm:$0xff]
        %v558 = vld [vmem:[%s516 + $0xa8] sm:$0xff]
        %v559 = vld [vmem:[%s516 + $0xb0] sm:$0xff]
        %v560 = vld [vmem:[%s516 + $0xb8] sm:$0xff]
        %v561 = vld [vmem:[%s516 + $0xc0] sm:$0xff]
        %v562 = vld [vmem:[%s516 + $0xc8] sm:$0xff]
        %v563 = vld [vmem:[%s516 + $0xd0] sm:$0xff]
        %v564 = vld [vmem:[%s516 + $0xd8] sm:$0xff]
        %v565 = vld [vmem:[%s516 + $0xe0] sm:$0xff]
        %v566 = vld [vmem:[%s516 + $0xe8] sm:$0xff]
        %v567 = vld [vmem:[%s516 + $0xf0] sm:$0xff]
        %v568 = vld [vmem:[%s516 + $0xf8] sm:$0xff]
        %v569 = vpack.c.bf16 %v538, %v537
        %v570 = vpack.c.bf16 %v540, %v539
        %v571 = vpack.c.bf16 %v542, %v541
        %v572 = vpack.c.bf16 %v544, %v543
        %v573 = vpack.c.bf16 %v546, %v545
        %v574 = vpack.c.bf16 %v548, %v547
        %v575 = vpack.c.bf16 %v550, %v549
        %v576 = vpack.c.bf16 %v552, %v551
        %v577 = vpack.c.bf16 %v554, %v553
        %v578 = vpack.c.bf16 %v556, %v555
        %v579 = vpack.c.bf16 %v558, %v557
        %v580 = vpack.c.bf16 %v560, %v559
        %v581 = vpack.c.bf16 %v562, %v561
        %v582 = vpack.c.bf16 %v564, %v563
        %v583 = vpack.c.bf16 %v566, %v565
        %v584 = vpack.c.bf16 %v568, %v567
        %v585 = vld [vmem:[%s3] sm:$0xff]
        %v586 = vld [vmem:[%s3 + $0x8] sm:$0xff]
        %v587 = vld [vmem:[%s3 + $0x10] sm:$0xff]
        %v588 = vld [vmem:[%s3 + $0x18] sm:$0xff]
        %590 = vset.pattern.permute.xlu0 0
        %591 = vperm.xlu0 %590, %v585
        %v592 = vpop.permute.xlu0 %591
        %595 = vset.pattern.permute.xlu0 0
        %596 = vperm.xlu0 %595, %v586
        %v597 = vpop.permute.xlu0 %596
        %600 = vset.pattern.permute.xlu0 0
        %601 = vperm.xlu0 %600, %v587
        %v602 = vpop.permute.xlu0 %601
        %605 = vset.pattern.permute.xlu0 0
        %606 = vperm.xlu0 %605, %v588
        %v607 = vpop.permute.xlu0 %606
        %v613 = vunpack.c.l.b16 %v533
        %v614 = vunpack.c.l.b16 %v534
        %v615 = vunpack.c.l.b16 %v535
        %v616 = vunpack.c.l.b16 %v536
        %v617 = vpack.c.b16 %v614, %v613
        %v618 = vpack.c.b16 %v616, %v615
        %vm619 = vcmask 97280
        %v621 = vsel %vm619, %v617, 0
        %v624 = vsel %vm619, %v618, 0
        %v627 = vsel %vm619, %v569, 0
        %v630 = vsel %vm619, %v570, 0
        %v633 = vsel %vm619, %v571, 0
        %v636 = vsel %vm619, %v572, 0
        %v639 = vsel %vm619, %v573, 0
        %v642 = vsel %vm619, %v574, 0
        %v645 = vsel %vm619, %v575, 0
        %v648 = vsel %vm619, %v576, 0
        %v651 = vsel %vm619, %v577, 0
        %v654 = vsel %vm619, %v578, 0
        %v657 = vsel %vm619, %v579, 0
        %v660 = vsel %vm619, %v580, 0
        %v663 = vsel %vm619, %v581, 0
        %v666 = vsel %vm619, %v582, 0
        %v669 = vsel %vm619, %v583, 0
        %v672 = vsel %vm619, %v584, 0
        %674 = vmatprep.subr.bf16.mxu0 0
        %675 = vmatpush1.bf16.xpose.msra.mxu0 %v627
        %676 = vmatprep.subr.bf16.mxu0 0
        %677 = vmatpush1.bf16.xpose.msra.mxu0 %v630
        %678 = vmatprep.subr.bf16.mxu0 0
        %679 = vmatpush1.bf16.xpose.msra.mxu0 %v633
        %680 = vmatprep.subr.bf16.mxu0 0
        %681 = vmatpush1.bf16.xpose.msra.mxu0 %v636
        %682 = vmatprep.subr.bf16.mxu0 0
        %683 = vmatpush1.bf16.xpose.msra.mxu0 %v639
        %684 = vmatprep.subr.bf16.mxu0 0
        %685 = vmatpush1.bf16.xpose.msra.mxu0 %v642
        %686 = vmatprep.subr.bf16.mxu0 0
        %687 = vmatpush1.bf16.xpose.msra.mxu0 %v645
        %688 = vmatprep.subr.bf16.mxu0 0
        %689 = vmatpush1.bf16.xpose.msra.mxu0 %v648
        %690 = vmatprep.subr.bf16.mxu0 0
        %691 = vmatpush1.bf16.xpose.msra.mxu0 %v651
        %692 = vmatprep.subr.bf16.mxu0 0
        %693 = vmatpush1.bf16.xpose.msra.mxu0 %v654
        %694 = vmatprep.subr.bf16.mxu0 0
        %695 = vmatpush1.bf16.xpose.msra.mxu0 %v657
        %696 = vmatprep.subr.bf16.mxu0 0
        %697 = vmatpush1.bf16.xpose.msra.mxu0 %v660
        %698 = vmatprep.subr.bf16.mxu0 0
        %699 = vmatpush1.bf16.xpose.msra.mxu0 %v663
        %700 = vmatprep.subr.bf16.mxu0 0
        %701 = vmatpush1.bf16.xpose.msra.mxu0 %v666
        %702 = vmatprep.subr.bf16.mxu0 0
        %703 = vmatpush1.bf16.xpose.msra.mxu0 %v669
        %704 = vmatprep.subr.bf16.mxu0 0
        %705 = vmatpush1.bf16.xpose.msra.mxu0 %v672
        %706 = vmatprep.mubr.bf16.mxu0 0
        %707 = vmatmul.mubr.bf16.gmra.mrb[0].mxu0 %v621
        %v708 = vpop.f32.mrb[0].mxu0
        %v709 = vadd.f32 %v592, %v708
        %v710 = vpop.f32.mrb[0].mxu0
        %v711 = vadd.f32 %v592, %v710
        %v712 = vpop.f32.mrb[0].mxu0
        %v713 = vadd.f32 %v597, %v712
        %v714 = vpop.f32.mrb[0].mxu0
        %v715 = vadd.f32 %v597, %v714
        %716 = vmatprep.mubr.bf16.mxu0 0
        %717 = vmatmul.mubr.bf16.gmra.mrb[0].mxu0 %v624
        %v718 = vpop.f32.mrb[0].mxu0
        %v719 = vadd.f32 %v602, %v718
        %v720 = vpop.f32.mrb[0].mxu0
        %v721 = vadd.f32 %v602, %v720
        %v722 = vpop.f32.mrb[0].mxu0
        %v723 = vadd.f32 %v607, %v722
        %v724 = vpop.f32.mrb[0].mxu0
        %v725 = vadd.f32 %v607, %v724
        %726 = vdwg.mxu0
        %v727 = vmul.f32 %v709, 0.5
        %v728 = vmul.f32 %v711, 0.5
        %v729 = vmul.f32 %v713, 0.5
        %v730 = vmul.f32 %v715, 0.5
        %v731 = vmul.f32 %v719, 0.5
        %v732 = vmul.f32 %v721, 0.5
        %v733 = vmul.f32 %v723, 0.5
        %v734 = vmul.f32 %v725, 0.5
        %v735 = vmax.f32 %v709, %v727
        %v736 = vmax.f32 %v711, %v728
        %v737 = vmax.f32 %v713, %v729
        %v738 = vmax.f32 %v715, %v730
        %v739 = vmax.f32 %v719, %v731
        %v740 = vmax.f32 %v721, %v732
        %v741 = vmax.f32 %v723, %v733
        %v742 = vmax.f32 %v725, %v734
        %743 = vset.pattern.permute.xlu0 1
        %744 = vperm.xlu0 %743, %v585
        %v745 = vpop.permute.xlu0 %744
        %747 = vset.pattern.permute.xlu0 1
        %748 = vperm.xlu0 %747, %v586
        %v749 = vpop.permute.xlu0 %748
        %751 = vset.pattern.permute.xlu0 1
        %752 = vperm.xlu0 %751, %v587
        %v753 = vpop.permute.xlu0 %752
        %755 = vset.pattern.permute.xlu0 1
        %756 = vperm.xlu0 %755, %v588
        %v757 = vpop.permute.xlu0 %756
        %v759 = vmul.f32 %v735, %v745
        %v760 = vmul.f32 %v736, %v745
        %v761 = vmul.f32 %v737, %v749
        %v762 = vmul.f32 %v738, %v749
        %v763 = vmul.f32 %v739, %v753
        %v764 = vmul.f32 %v740, %v753
        %v765 = vmul.f32 %v741, %v757
        %v766 = vmul.f32 %v742, %v757
        %767 = vset.pattern.permute.xlu0 2
        %768 = vperm.xlu0 %767, %v585
        %v769 = vpop.permute.xlu0 %768
        %771 = vset.pattern.permute.xlu0 2
        %772 = vperm.xlu0 %771, %v586
        %v773 = vpop.permute.xlu0 %772
        %775 = vset.pattern.permute.xlu0 2
        %776 = vperm.xlu0 %775, %v587
        %v777 = vpop.permute.xlu0 %776
        %779 = vset.pattern.permute.xlu0 2
        %780 = vperm.xlu0 %779, %v588
        %v781 = vpop.permute.xlu0 %780
        %v783 = vadd.f32 %v759, %v769
        %v784 = vadd.f32 %v760, %v769
        %v785 = vadd.f32 %v761, %v773
        %v786 = vadd.f32 %v762, %v773
        %v787 = vadd.f32 %v763, %v777
        %v788 = vadd.f32 %v764, %v777
        %v789 = vadd.f32 %v765, %v781
        %v790 = vadd.f32 %v766, %v781
        %v791 = vmul.f32 %v783, 0.25
        %v792 = vmul.f32 %v784, 0.25
        %v793 = vmul.f32 %v785, 0.25
        %v794 = vmul.f32 %v786, 0.25
        %v795 = vmul.f32 %v787, 0.25
        %v796 = vmul.f32 %v788, 0.25
        %v797 = vmul.f32 %v789, 0.25
        %v798 = vmul.f32 %v790, 0.25
        %v799 = vmax.f32 %v783, %v791
        %v800 = vmax.f32 %v784, %v792
        %v801 = vmax.f32 %v785, %v793
        %v802 = vmax.f32 %v786, %v794
        %v803 = vmax.f32 %v787, %v795
        %v804 = vmax.f32 %v788, %v796
        %v805 = vmax.f32 %v789, %v797
        %v806 = vmax.f32 %v790, %v798
        %v807 = vld [vmem:[%s4] sm:$0xf]
        %v808 = vld [vmem:[%s4 + $0x4] sm:$0xf]
        %v809 = vpack.c.bf16 %v801, %v799
        %v810 = vpack.c.bf16 %v802, %v800
        %v811 = vpack.c.bf16 %v805, %v803
        %v812 = vpack.c.bf16 %v806, %v804
        %v813 = vld [vmem:[%s5] sm:$0xff]
        %v814 = vld [vmem:[%s5 + $0x8] sm:$0xff]
        %816 = vset.pattern.permute.xlu0 0
        %817 = vperm.xlu0 %816, %v813
        %v818 = vpop.permute.xlu0 %817
        %821 = vset.pattern.permute.xlu0 0
        %822 = vperm.xlu0 %821, %v814
        %v823 = vpop.permute.xlu0 %822
        %v827 = vunpack.c.l.b16 %v807
        %v828 = vunpack.c.l.b16 %v808
        %v829 = vpack.c.b16 %v828, %v827
        %vm830 = vcmask 261120
        %v832 = vsel %vm830, %v829, 0
        %834 = vmatprep.subr.bf16.mxu0 %v810
        %835 = vmatpush1.bf16.msra.mxu0 %v809
        %836 = vmatprep.subr.bf16.mxu0 %v812
        %837 = vmatpush1.bf16.msra.mxu0 %v811
        %838 = vmatprep.subr.bf16.mxu0 0
        %839 = vmatpush1.bf16.msra.mxu0 0
        %840 = vmatprep.subr.bf16.mxu0 0
        %841 = vmatpush1.bf16.msra.mxu0 0
        %842 = vmatprep.subr.bf16.mxu0 0
        %843 = vmatpush1.bf16.msra.mxu0 0
        %844 = vmatprep.subr.bf16.mxu0 0
        %845 = vmatpush1.bf16.msra.mxu0 0
        %846 = vmatprep.subr.bf16.mxu0 0
        %847 = vmatpush1.bf16.msra.mxu0 0
        %848 = vmatprep.subr.bf16.mxu0 0
        %849 = vmatpush1.bf16.msra.mxu0 0
        %850 = vmatprep.subr.bf16.mxu0 0
        %851 = vmatpush1.bf16.msra.mxu0 0
        %852 = vmatprep.subr.bf16.mxu0 0
        %853 = vmatpush1.bf16.msra.mxu0 0
        %854 = vmatprep.subr.bf16.mxu0 0
        %855 = vmatpush1.bf16.msra.mxu0 0
        %856 = vmatprep.subr.bf16.mxu0 0
        %857 = vmatpush1.bf16.msra.mxu0 0
        %858 = vmatprep.subr.bf16.mxu0 0
        %859 = vmatpush1.bf16.msra.mxu0 0
        %860 = vmatprep.subr.bf16.mxu0 0
        %861 = vmatpush1.bf16.msra.mxu0 0
        %862 = vmatprep.subr.bf16.mxu0 0
        %863 = vmatpush1.bf16.msra.mxu0 0
        %864 = vmatprep.subr.bf16.mxu0 0
        %865 = vmatpush1.bf16.msra.mxu0 0
        %866 = vmatprep.mubr.bf16.mxu0 0
        %867 = vmatmul.mubr.bf16.gmra.mrb[0].mxu0 %v832
        %v868 = vpop.f32.mrb[0].mxu0
        %v869 = vadd.f32 %v818, %v868
        %v870 = vpop.f32.mrb[0].mxu0
        %v871 = vadd.f32 %v818, %v870
        %v872 = vpop.f32.mrb[0].mxu0
        %v873 = vadd.f32 %v823, %v872
        %v874 = vpop.f32.mrb[0].mxu0
        %v875 = vadd.f32 %v823, %v874
        %876 = vdwg.mxu0
        %v877 = vmul.f32 %v869, 0.5
        %v878 = vmul.f32 %v871, 0.5
        %v879 = vmul.f32 %v873, 0.5
        %v880 = vmul.f32 %v875, 0.5
        %v881 = vmax.f32 %v869, %v877
        %v882 = vmax.f32 %v871, %v878
        %v883 = vmax.f32 %v873, %v879
        %v884 = vmax.f32 %v875, %v880
        %885 = vset.pattern.permute.xlu0 1
        %886 = vperm.xlu0 %885, %v813
        %v887 = vpop.permute.xlu0 %886
        %889 = vset.pattern.permute.xlu0 1
        %890 = vperm.xlu0 %889, %v814
        %v891 = vpop.permute.xlu0 %890
        %v893 = vmul.f32 %v881, %v887
        %v894 = vmul.f32 %v882, %v887
        %v895 = vmul.f32 %v883, %v891
        %v896 = vmul.f32 %v884, %v891
        %897 = vset.pattern.permute.xlu0 2
        %898 = vperm.xlu0 %897, %v813
        %v899 = vpop.permute.xlu0 %898
        %901 = vset.pattern.permute.xlu0 2
        %902 = vperm.xlu0 %901, %v814
        %v903 = vpop.permute.xlu0 %902
        %v905 = vadd.f32 %v893, %v899
        %v906 = vadd.f32 %v894, %v899
        %v907 = vadd.f32 %v895, %v903
        %v908 = vadd.f32 %v896, %v903
        %v909 = vmul.f32 %v905, 0.25
        %v910 = vmul.f32 %v906, 0.25
        %v911 = vmul.f32 %v907, 0.25
        %v912 = vmul.f32 %v908, 0.25
        %v913 = vmax.f32 %v905, %v909
        %v914 = vmax.f32 %v906, %v910
        %v915 = vmax.f32 %v907, %v911
        %v916 = vmax.f32 %v908, %v912
        %v917 = vld [vmem:[%s6] sm:$0x3]
        %v918 = vpack.c.bf16 %v915, %v913
        %v919 = vpack.c.bf16 %v916, %v914
        %v920 = vld [vmem:[%s7] sm:$0xf]
        %922 = vset.pattern.permute.xlu0 0
        %923 = vperm.xlu0 %922, %v920
        %v924 = vpop.permute.xlu0 %923
        %vm926 = vcmask 130048
        %v928 = vsel %vm926, %v917, 0
        %930 = vmatprep.subr.bf16.mxu0 %v919
        %931 = vmatpush1.bf16.msra.mxu0 %v918
        %932 = vmatprep.subr.bf16.mxu0 0
        %933 = vmatpush1.bf16.msra.mxu0 0
        %934 = vmatprep.subr.bf16.mxu0 0
        %935 = vmatpush1.bf16.msra.mxu0 0
        %936 = vmatprep.subr.bf16.mxu0 0
        %937 = vmatpush1.bf16.msra.mxu0 0
        %938 = vmatprep.subr.bf16.mxu0 0
        %939 = vmatpush1.bf16.msra.mxu0 0
        %940 = vmatprep.subr.bf16.mxu0 0
        %941 = vmatpush1.bf16.msra.mxu0 0
        %942 = vmatprep.subr.bf16.mxu0 0
        %943 = vmatpush1.bf16.msra.mxu0 0
        %944 = vmatprep.subr.bf16.mxu0 0
        %945 = vmatpush1.bf16.msra.mxu0 0
        %946 = vmatprep.subr.bf16.mxu0 0
        %947 = vmatpush1.bf16.msra.mxu0 0
        %948 = vmatprep.subr.bf16.mxu0 0
        %949 = vmatpush1.bf16.msra.mxu0 0
        %950 = vmatprep.subr.bf16.mxu0 0
        %951 = vmatpush1.bf16.msra.mxu0 0
        %952 = vmatprep.subr.bf16.mxu0 0
        %953 = vmatpush1.bf16.msra.mxu0 0
        %954 = vmatprep.subr.bf16.mxu0 0
        %955 = vmatpush1.bf16.msra.mxu0 0
        %956 = vmatprep.subr.bf16.mxu0 0
        %957 = vmatpush1.bf16.msra.mxu0 0
        %958 = vmatprep.subr.bf16.mxu0 0
        %959 = vmatpush1.bf16.msra.mxu0 0
        %960 = vmatprep.subr.bf16.mxu0 0
        %961 = vmatpush1.bf16.msra.mxu0 0
        %962 = vmatprep.mubr.bf16.mxu0 0
        %963 = vmatmul.mubr.bf16.gmra.mrb[0].mxu0 %v928
        %v964 = vpop.f32.mrb[0].mxu0
        %v965 = vadd.f32 %v924, %v964
        %v966 = vpop.f32.mrb[0].mxu0
        %v967 = vadd.f32 %v924, %v966
        %v968 = vpop.f32.mrb[0].mxu0
        %v969 = vpop.f32.mrb[0].mxu0
        %970 = vdwg.mxu0
        %v971 = vld [vmem:[%s8] sm:$0xf]
        %v972 = vld [vmem:[%s8 + $0x4] sm:$0xf]
        %v973 = vpack.c.bf16 %v965, %v965
        %v974 = vpack.c.bf16 %v967, %v967
        %v975 = vld [vmem:[%s9] sm:$0xff]
        %v976 = vld [vmem:[%s9 + $0x8] sm:$0xff]
        %978 = vset.pattern.permute.xlu0 0
        %979 = vperm.xlu0 %978, %v975
        %v980 = vpop.permute.xlu0 %979
        %983 = vset.pattern.permute.xlu0 0
        %984 = vperm.xlu0 %983, %v976
        %v985 = vpop.permute.xlu0 %984
        %v989 = vunpack.c.l.b16 %v971
        %v990 = vunpack.c.l.b16 %v972
        %v991 = vpack.c.b16 %v990, %v989
        %vm992 = vcmask 31744
        %v994 = vsel %vm992, %v991, 0
        %vm996 = vcmask 1041408
        %v998 = vsel %vm996, %v973, 0
        %v1001 = vsel %vm996, %v974, 0
        %1003 = vmatprep.subr.bf16.mxu0 %v1001
        %1004 = vmatpush1.bf16.msra.mxu0 %v998
        %1005 = vmatprep.subr.bf16.mxu0 0
        %1006 = vmatpush1.bf16.msra.mxu0 0
        %1007 = vmatprep.subr.bf16.mxu0 0
        %1008 = vmatpush1.bf16.msra.mxu0 0
        %1009 = vmatprep.subr.bf16.mxu0 0
        %1010 = vmatpush1.bf16.msra.mxu0 0
        %1011 = vmatprep.subr.bf16.mxu0 0
        %1012 = vmatpush1.bf16.msra.mxu0 0
        %1013 = vmatprep.subr.bf16.mxu0 0
        %1014 = vmatpush1.bf16.msra.mxu0 0
        %1015 = vmatprep.subr.bf16.mxu0 0
        %1016 = vmatpush1.bf16.msra.mxu0 0
        %1017 = vmatprep.subr.bf16.mxu0 0
        %1018 = vmatpush1.bf16.msra.mxu0 0
        %1019 = vmatprep.subr.bf16.mxu0 0
        %1020 = vmatpush1.bf16.msra.mxu0 0
        %1021 = vmatprep.subr.bf16.mxu0 0
        %1022 = vmatpush1.bf16.msra.mxu0 0
        %1023 = vmatprep.subr.bf16.mxu0 0
        %1024 = vmatpush1.bf16.msra.mxu0 0
        %1025 = vmatprep.subr.bf16.mxu0 0
        %1026 = vmatpush1.bf16.msra.mxu0 0
        %1027 = vmatprep.subr.bf16.mxu0 0
        %1028 = vmatpush1.bf16.msra.mxu0 0
        %1029 = vmatprep.subr.bf16.mxu0 0
        %1030 = vmatpush1.bf16.msra.mxu0 0
        %1031 = vmatprep.subr.bf16.mxu0 0
        %1032 = vmatpush1.bf16.msra.mxu0 0
        %1033 = vmatprep.subr.bf16.mxu0 0
        %1034 = vmatpush1.bf16.msra.mxu0 0
        %1035 = vmatprep.mubr.bf16.mxu0 0
        %1036 = vmatmul.mubr.bf16.gmra.mrb[0].mxu0 %v994
        %v1037 = vpop.f32.mrb[0].mxu0
        %v1038 = vadd.f32 %v980, %v1037
        %v1039 = vpop.f32.mrb[0].mxu0
        %v1040 = vadd.f32 %v980, %v1039
        %v1041 = vpop.f32.mrb[0].mxu0
        %v1042 = vadd.f32 %v985, %v1041
        %v1043 = vpop.f32.mrb[0].mxu0
        %v1044 = vadd.f32 %v985, %v1043
        %1045 = vdwg.mxu0
        %v1046 = vmul.f32 %v1038, 0.5
        %v1047 = vmul.f32 %v1040, 0.5
        %v1048 = vmul.f32 %v1042, 0.5
        %v1049 = vmul.f32 %v1044, 0.5
        %v1050 = vmax.f32 %v1038, %v1046
        %v1051 = vmax.f32 %v1040, %v1047
        %v1052 = vmax.f32 %v1042, %v1048
        %v1053 = vmax.f32 %v1044, %v1049
        %1054 = vset.pattern.permute.xlu0 1
        %1055 = vperm.xlu0 %1054, %v975
        %v1056 = vpop.permute.xlu0 %1055
        %1058 = vset.pattern.permute.xlu0 1
        %1059 = vperm.xlu0 %1058, %v976
        %v1060 = vpop.permute.xlu0 %1059
        %v1062 = vmul.f32 %v1050, %v1056
        %v1063 = vmul.f32 %v1051, %v1056
        %v1064 = vmul.f32 %v1052, %v1060
        %v1065 = vmul.f32 %v1053, %v1060
        %1066 = vset.pattern.permute.xlu0 2
        %1067 = vperm.xlu0 %1066, %v975
        %v1068 = vpop.permute.xlu0 %1067
        %1070 = vset.pattern.permute.xlu0 2
        %1071 = vperm.xlu0 %1070, %v976
        %v1072 = vpop.permute.xlu0 %1071
        %v1074 = vadd.f32 %v1062, %v1068
        %v1075 = vadd.f32 %v1063, %v1068
        %v1076 = vadd.f32 %v1064, %v1072
        %v1077 = vadd.f32 %v1065, %v1072
        %v1078 = vmul.f32 %v1074, 0.25
        %v1079 = vmul.f32 %v1075, 0.25
        %v1080 = vmul.f32 %v1076, 0.25
        %v1081 = vmul.f32 %v1077, 0.25
        %v1082 = vmax.f32 %v1074, %v1078
        %v1083 = vmax.f32 %v1075, %v1079
        %v1084 = vmax.f32 %v1076, %v1080
        %v1085 = vmax.f32 %v1077, %v1081
        %v1086 = vld [vmem:[%s10] sm:$0xf]
        %v1087 = vld [vmem:[%s10 + $0x4] sm:$0xf]
        %v1088 = vld [vmem:[%s10 + $0x8] sm:$0xf]
        %v1089 = vld [vmem:[%s10 + $0xc] sm:$0xf]
        %v1090 = vpack.c.bf16 %v1084, %v1082
        %v1091 = vpack.c.bf16 %v1085, %v1083
        %v1092 = vld [vmem:[%s11] sm:$0xff]
        %v1093 = vld [vmem:[%s11 + $0x8] sm:$0xff]
        %v1094 = vld [vmem:[%s11 + $0x10] sm:$0xff]
        %v1095 = vld [vmem:[%s11 + $0x18] sm:$0xff]
        %1097 = vset.pattern.permute.xlu0 0
        %1098 = vperm.xlu0 %1097, %v1092
        %v1099 = vpop.permute.xlu0 %1098
        %1102 = vset.pattern.permute.xlu0 0
        %1103 = vperm.xlu0 %1102, %v1093
        %v1104 = vpop.permute.xlu0 %1103
        %1107 = vset.pattern.permute.xlu0 0
        %1108 = vperm.xlu0 %1107, %v1094
        %v1109 = vpop.permute.xlu0 %1108
        %1112 = vset.pattern.permute.xlu0 0
        %1113 = vperm.xlu0 %1112, %v1095
        %v1114 = vpop.permute.xlu0 %1113
        %v1120 = vunpack.c.l.b16 %v1086
        %v1121 = vunpack.c.l.b16 %v1087
        %v1122 = vunpack.c.l.b16 %v1088
        %v1123 = vunpack.c.l.b16 %v1089
        %v1124 = vpack.c.b16 %v1121, %v1120
        %v1125 = vpack.c.b16 %v1123, %v1122
        %v1127 = vsel %vm926, %v1124, 0
        %v1130 = vsel %vm926, %v1125, 0
        %1132 = vmatprep.subr.bf16.mxu0 %v1091
        %1133 = vmatpush1.bf16.msra.mxu0 %v1090
        %1134 = vmatprep.subr.bf16.mxu0 0
        %1135 = vmatpush1.bf16.msra.mxu0 0
        %1136 = vmatprep.subr.bf16.mxu0 0
        %1137 = vmatpush1.bf16.msra.mxu0 0
        %1138 = vmatprep.subr.bf16.mxu0 0
        %1139 = vmatpush1.bf16.msra.mxu0 0
        %1140 = vmatprep.subr.bf16.mxu0 0
        %1141 = vmatpush1.bf16.msra.mxu0 0
        %1142 = vmatprep.subr.bf16.mxu0 0
        %1143 = vmatpush1.bf16.msra.mxu0 0
        %1144 = vmatprep.subr.bf16.mxu0 0
        %1145 = vmatpush1.bf16.msra.mxu0 0
        %1146 = vmatprep.subr.bf16.mxu0 0
        %1147 = vmatpush1.bf16.msra.mxu0 0
        %1148 = vmatprep.subr.bf16.mxu0 0
        %1149 = vmatpush1.bf16.msra.mxu0 0
        %1150 = vmatprep.subr.bf16.mxu0 0
        %1151 = vmatpush1.bf16.msra.mxu0 0
        %1152 = vmatprep.subr.bf16.mxu0 0
        %1153 = vmatpush1.bf16.msra.mxu0 0
        %1154 = vmatprep.subr.bf16.mxu0 0
        %1155 = vmatpush1.bf16.msra.mxu0 0
        %1156 = vmatprep.subr.bf16.mxu0 0
        %1157 = vmatpush1.bf16.msra.mxu0 0
        %1158 = vmatprep.subr.bf16.mxu0 0
        %1159 = vmatpush1.bf16.msra.mxu0 0
        %1160 = vmatprep.subr.bf16.mxu0 0
        %1161 = vmatpush1.bf16.msra.mxu0 0
        %1162 = vmatprep.subr.bf16.mxu0 0
        %1163 = vmatpush1.bf16.msra.mxu0 0
        %1164 = vmatprep.mubr.bf16.mxu0 0
        %1165 = vmatmul.mubr.bf16.gmra.mrb[0].mxu0 %v1127
        %v1166 = vpop.f32.mrb[0].mxu0
        %v1167 = vadd.f32 %v1099, %v1166
        %v1168 = vpop.f32.mrb[0].mxu0
        %v1169 = vadd.f32 %v1099, %v1168
        %v1170 = vpop.f32.mrb[0].mxu0
        %v1171 = vadd.f32 %v1104, %v1170
        %v1172 = vpop.f32.mrb[0].mxu0
        %v1173 = vadd.f32 %v1104, %v1172
        %1174 = vmatprep.mubr.bf16.mxu0 0
        %1175 = vmatmul.mubr.bf16.gmra.mrb[0].mxu0 %v1130
        %v1176 = vpop.f32.mrb[0].mxu0
        %v1177 = vadd.f32 %v1109, %v1176
        %v1178 = vpop.f32.mrb[0].mxu0
        %v1179 = vadd.f32 %v1109, %v1178
        %v1180 = vpop.f32.mrb[0].mxu0
        %v1181 = vadd.f32 %v1114, %v1180
        %v1182 = vpop.f32.mrb[0].mxu0
        %v1183 = vadd.f32 %v1114, %v1182
        %1184 = vdwg.mxu0
        %v1185 = vmul.f32 %v1167, 0.5
        %v1186 = vmul.f32 %v1169, 0.5
        %v1187 = vmul.f32 %v1171, 0.5
        %v1188 = vmul.f32 %v1173, 0.5
        %v1189 = vmul.f32 %v1177, 0.5
        %v1190 = vmul.f32 %v1179, 0.5
        %v1191 = vmul.f32 %v1181, 0.5
        %v1192 = vmul.f32 %v1183, 0.5
        %v1193 = vmax.f32 %v1167, %v1185
        %v1194 = vmax.f32 %v1169, %v1186
        %v1195 = vmax.f32 %v1171, %v1187
        %v1196 = vmax.f32 %v1173, %v1188
        %v1197 = vmax.f32 %v1177, %v1189
        %v1198 = vmax.f32 %v1179, %v1190
        %v1199 = vmax.f32 %v1181, %v1191
        %v1200 = vmax.f32 %v1183, %v1192
        %1201 = vset.pattern.permute.xlu0 1
        %1202 = vperm.xlu0 %1201, %v1092
        %v1203 = vpop.permute.xlu0 %1202
        %1205 = vset.pattern.permute.xlu0 1
        %1206 = vperm.xlu0 %1205, %v1093
        %v1207 = vpop.permute.xlu0 %1206
        %1209 = vset.pattern.permute.xlu0 1
        %1210 = vperm.xlu0 %1209, %v1094
        %v1211 = vpop.permute.xlu0 %1210
        %1213 = vset.pattern.permute.xlu0 1
        %1214 = vperm.xlu0 %1213, %v1095
        %v1215 = vpop.permute.xlu0 %1214
        %v1217 = vmul.f32 %v1193, %v1203
        %v1218 = vmul.f32 %v1194, %v1203
        %v1219 = vmul.f32 %v1195, %v1207
        %v1220 = vmul.f32 %v1196, %v1207
        %v1221 = vmul.f32 %v1197, %v1211
        %v1222 = vmul.f32 %v1198, %v1211
        %v1223 = vmul.f32 %v1199, %v1215
        %v1224 = vmul.f32 %v1200, %v1215
        %1225 = vset.pattern.permute.xlu0 2
        %1226 = vperm.xlu0 %1225, %v1092
        %v1227 = vpop.permute.xlu0 %1226
        %1229 = vset.pattern.permute.xlu0 2
        %1230 = vperm.xlu0 %1229, %v1093
        %v1231 = vpop.permute.xlu0 %1230
        %1233 = vset.pattern.permute.xlu0 2
        %1234 = vperm.xlu0 %1233, %v1094
        %v1235 = vpop.permute.xlu0 %1234
        %1237 = vset.pattern.permute.xlu0 2
        %1238 = vperm.xlu0 %1237, %v1095
        %v1239 = vpop.permute.xlu0 %1238
        %v1241 = vadd.f32 %v1217, %v1227
        %v1242 = vadd.f32 %v1218, %v1227
        %v1243 = vadd.f32 %v1219, %v1231
        %v1244 = vadd.f32 %v1220, %v1231
        %v1245 = vadd.f32 %v1221, %v1235
        %v1246 = vadd.f32 %v1222, %v1235
        %v1247 = vadd.f32 %v1223, %v1239
        %v1248 = vadd.f32 %v1224, %v1239
        %v1249 = vmul.f32 %v1241, 0.25
        %v1250 = vmul.f32 %v1242, 0.25
        %v1251 = vmul.f32 %v1243, 0.25
        %v1252 = vmul.f32 %v1244, 0.25
        %v1253 = vmul.f32 %v1245, 0.25
        %v1254 = vmul.f32 %v1246, 0.25
        %v1255 = vmul.f32 %v1247, 0.25
        %v1256 = vmul.f32 %v1248, 0.25
        %v1257 = vmax.f32 %v1241, %v1249
        %v1258 = vmax.f32 %v1242, %v1250
        %v1259 = vmax.f32 %v1243, %v1251
        %v1260 = vmax.f32 %v1244, %v1252
        %v1261 = vmax.f32 %v1245, %v1253
        %v1262 = vmax.f32 %v1246, %v1254
        %v1263 = vmax.f32 %v1247, %v1255
        %v1264 = vmax.f32 %v1248, %v1256
        %v1265 = vld [vmem:[%s12] sm:$0xf]
        %v1266 = vld [vmem:[%s12 + $0x4] sm:$0x3]
        %v1267 = vpack.c.bf16 %v1259, %v1257
        %v1268 = vpack.c.bf16 %v1260, %v1258
        %v1269 = vpack.c.bf16 %v1263, %v1261
        %v1270 = vpack.c.bf16 %v1264, %v1262
        %v1271 = vld [vmem:[%s13] sm:$0xff]
        %v1272 = vld [vmem:[%s13 + $0x8] sm:$0xf]
        %1274 = vset.pattern.permute.xlu0 0
        %1275 = vperm.xlu0 %1274, %v1271
        %v1276 = vpop.permute.xlu0 %1275
        %1279 = vset.pattern.permute.xlu0 0
        %1280 = vperm.xlu0 %1279, %v1272
        %v1281 = vpop.permute.xlu0 %1280
        %v1285 = vunpack.c.l.b16 %v1265
        %v1286 = vunpack.c.l.b16 %v1266
        %v1287 = vpack.c.b16 %v1286, %v1285
        %v1289 = vsel %vm830, %v1287, 0
        %1291 = vmatprep.subr.bf16.mxu0 %v1268
        %1292 = vmatpush1.bf16.msra.mxu0 %v1267
        %1293 = vmatprep.subr.bf16.mxu0 %v1270
        %1294 = vmatpush1.bf16.msra.mxu0 %v1269
        %1295 = vmatprep.subr.bf16.mxu0 0
        %1296 = vmatpush1.bf16.msra.mxu0 0
        %1297 = vmatprep.subr.bf16.mxu0 0
        %1298 = vmatpush1.bf16.msra.mxu0 0
        %1299 = vmatprep.subr.bf16.mxu0 0
        %1300 = vmatpush1.bf16.msra.mxu0 0
        %1301 = vmatprep.subr.bf16.mxu0 0
        %1302 = vmatpush1.bf16.msra.mxu0 0
        %1303 = vmatprep.subr.bf16.mxu0 0
        %1304 = vmatpush1.bf16.msra.mxu0 0
        %1305 = vmatprep.subr.bf16.mxu0 0
        %1306 = vmatpush1.bf16.msra.mxu0 0
        %1307 = vmatprep.subr.bf16.mxu0 0
        %1308 = vmatpush1.bf16.msra.mxu0 0
        %1309 = vmatprep.subr.bf16.mxu0 0
        %1310 = vmatpush1.bf16.msra.mxu0 0
        %1311 = vmatprep.subr.bf16.mxu0 0
        %1312 = vmatpush1.bf16.msra.mxu0 0
        %1313 = vmatprep.subr.bf16.mxu0 0
        %1314 = vmatpush1.bf16.msra.mxu0 0
        %1315 = vmatprep.subr.bf16.mxu0 0
        %1316 = vmatpush1.bf16.msra.mxu0 0
        %1317 = vmatprep.subr.bf16.mxu0 0
        %1318 = vmatpush1.bf16.msra.mxu0 0
        %1319 = vmatprep.subr.bf16.mxu0 0
        %1320 = vmatpush1.bf16.msra.mxu0 0
        %1321 = vmatprep.subr.bf16.mxu0 0
        %1322 = vmatpush1.bf16.msra.mxu0 0
        %1323 = vmatprep.mubr.bf16.mxu0 0
        %1324 = vmatmul.mubr.bf16.gmra.mrb[0].mxu0 %v1289
        %v1325 = vpop.f32.mrb[0].mxu0
        %v1326 = vadd.f32 %v1276, %v1325
        %v1327 = vpop.f32.mrb[0].mxu0
        %v1328 = vadd.f32 %v1276, %v1327
        %v1329 = vpop.f32.mrb[0].mxu0
        %v1330 = vadd.f32 %v1281, %v1329
        %v1331 = vpop.f32.mrb[0].mxu0
        %v1332 = vadd.f32 %v1281, %v1331
        %1333 = vdwg.mxu0
        %v1334 = vld [vmem:[%s1] sm:$0xff]
        %v1335 = vld [vmem:[%s1 + $0x8] sm:$0xf]
        %vm1336 = vcmp.gt.f32.partialorder %v1334, 0.0
        %vm1337 = vcmp.gt.f32.partialorder %v1335, 0.0
        %v1338 = vmax.f32 %v1326, 0.0
        %v1339 = vmax.f32 %v1328, 0.0
        %v1340 = vmax.f32 %v1330, 0.0
        %v1341 = vmax.f32 %v1332, 0.0
        %v1342 = vtanh.pop %v1326
        %v1343 = vtanh.pop %v1328
        %v1344 = vtanh.pop %v1330
        %v1345 = vtanh.pop %v1332
        %1347 = vset.pattern.permute.xlu0 0
        %1348 = vperm.xlu0 %1347, %v1334
        %v1349 = vpop.permute.xlu0 %1348
        %1352 = vset.pattern.permute.xlu0 0
        %1353 = vperm.xlu0 %1352, %v1335
        %v1354 = vpop.permute.xlu0 %1353
        %v1356 = vmul.f32 %v1349, %v1342
        %v1357 = vmul.f32 %v1349, %v1343
        %v1358 = vmul.f32 %v1354, %v1344
        %v1359 = vmul.f32 %v1354, %v1345
        %v1360 = vsel %vm1336, 1, 0
        %v1361 = vsel %vm1337, 1, 0
        %1362 = vset.pattern.permute.xlu0 1
        %1363 = vperm.xlu0 %1362, %v1360
        %v1364 = vpop.permute.xlu0 %1363
        %1365 = vset.pattern.permute.xlu0 1
        %1366 = vperm.xlu0 %1365, %v1361
        %v1367 = vpop.permute.xlu0 %1366
        %vm1368 = vcmp.eq.s32.totalorder %v1364, 1
        %vm1369 = vcmp.eq.s32.totalorder %v1367, 1
        %v1370 = vsel %vm1368, %v1338, %v1356
        %v1371 = vsel %vm1368, %v1339, %v1357
        %v1372 = vsel %vm1369, %v1340, %v1358
        %v1373 = vsel %vm1369, %v1341, %v1359
        %1374 = vxpose.xlu0.b32.start [1/16] %v1370, 128
        %1375 = vxpose.xlu0.b32.cont [2/16] %v1372, 128
        %1376 = vxpose.xlu0.b32.cont [3/16] 0.0, 128
        %1377 = vxpose.xlu0.b32.cont [4/16] 0.0, 128
        %1378 = vxpose.xlu0.b32.cont [5/16] 0.0, 128
        %1379 = vxpose.xlu0.b32.cont [6/16] 0.0, 128
        %1380 = vxpose.xlu0.b32.cont [7/16] 0.0, 128
        %1381 = vxpose.xlu0.b32.cont [8/16] 0.0, 128
        %1382 = vxpose.xlu0.b32.cont [9/16] 0.0, 128
        %1383 = vxpose.xlu0.b32.cont [10/16] 0.0, 128
        %1384 = vxpose.xlu0.b32.cont [11/16] 0.0, 128
        %1385 = vxpose.xlu0.b32.cont [12/16] 0.0, 128
        %1386 = vxpose.xlu0.b32.cont [13/16] 0.0, 128
        %1387 = vxpose.xlu0.b32.cont [14/16] 0.0, 128
        %1388 = vxpose.xlu0.b32.cont [15/16] 0.0, 128
        %1389 = vxpose.xlu0.b32.end [16/16] 0.0, 128
        %v1390 = vpop.trf.xlu0
        %v1391 = vpop.trf.xlu0
        %v1392 = vpop.trf.xlu0
        %v1393 = vpop.trf.xlu0
        %v1394 = vpop.trf.xlu0
        %v1395 = vpop.trf.xlu0
        %v1396 = vpop.trf.xlu0
        %v1397 = vpop.trf.xlu0
        %v1398 = vpop.trf.xlu0
        %v1399 = vpop.trf.xlu0
        %v1400 = vpop.trf.xlu0
        %v1401 = vpop.trf.xlu0
        %v1402 = vpop.trf.xlu0
        %v1403 = vpop.trf.xlu0
        %v1404 = vpop.trf.xlu0
        %v1405 = vpop.trf.xlu0
        %1406 = vxpose.xlu0.b32.start [1/16] %v1371, 128
        %1407 = vxpose.xlu0.b32.cont [2/16] %v1373, 128
        %1408 = vxpose.xlu0.b32.cont [3/16] 0.0, 128
        %1409 = vxpose.xlu0.b32.cont [4/16] 0.0, 128
        %1410 = vxpose.xlu0.b32.cont [5/16] 0.0, 128
        %1411 = vxpose.xlu0.b32.cont [6/16] 0.0, 128
        %1412 = vxpose.xlu0.b32.cont [7/16] 0.0, 128
        %1413 = vxpose.xlu0.b32.cont [8/16] 0.0, 128
        %1414 = vxpose.xlu0.b32.cont [9/16] 0.0, 128
        %1415 = vxpose.xlu0.b32.cont [10/16] 0.0, 128
        %1416 = vxpose.xlu0.b32.cont [11/16] 0.0, 128
        %1417 = vxpose.xlu0.b32.cont [12/16] 0.0, 128
        %1418 = vxpose.xlu0.b32.cont [13/16] 0.0, 128
        %1419 = vxpose.xlu0.b32.cont [14/16] 0.0, 128
        %1420 = vxpose.xlu0.b32.cont [15/16] 0.0, 128
        %1421 = vxpose.xlu0.b32.end [16/16] 0.0, 128
        %v1422 = vpop.trf.xlu0
        %v1423 = vpop.trf.xlu0
        %v1424 = vpop.trf.xlu0
        %v1425 = vpop.trf.xlu0
        %v1426 = vpop.trf.xlu0
        %v1427 = vpop.trf.xlu0
        %v1428 = vpop.trf.xlu0
        %v1429 = vpop.trf.xlu0
        %v1430 = vpop.trf.xlu0
        %v1431 = vpop.trf.xlu0
        %v1432 = vpop.trf.xlu0
        %v1433 = vpop.trf.xlu0
        %v1434 = vpop.trf.xlu0
        %v1435 = vpop.trf.xlu0
        %v1436 = vpop.trf.xlu0
        %v1437 = vpop.trf.xlu0
        %vm1438 = vcmp.ne.f32.partialorder %v537, 0.0
        %vm1439 = vcmp.ne.f32.partialorder %v538, 0.0
        %vm1440 = vcmp.ne.f32.partialorder %v539, 0.0
        %vm1441 = vcmp.ne.f32.partialorder %v540, 0.0
        %vm1442 = vcmp.ne.f32.partialorder %v541, 0.0
        %vm1443 = vcmp.ne.f32.partialorder %v542, 0.0
        %vm1444 = vcmp.ne.f32.partialorder %v543, 0.0
        %vm1445 = vcmp.ne.f32.partialorder %v544, 0.0
        %vm1446 = vcmp.ne.f32.partialorder %v545, 0.0
        %vm1447 = vcmp.ne.f32.partialorder %v546, 0.0
        %vm1448 = vcmp.ne.f32.partialorder %v547, 0.0
        %vm1449 = vcmp.ne.f32.partialorder %v548, 0.0
        %vm1450 = vcmp.ne.f32.partialorder %v549, 0.0
        %vm1451 = vcmp.ne.f32.partialorder %v550, 0.0
        %vm1452 = vcmp.ne.f32.partialorder %v551, 0.0
        %vm1453 = vcmp.ne.f32.partialorder %v552, 0.0
        %vm1454 = vcmp.ne.f32.partialorder %v553, 0.0
        %vm1455 = vcmp.ne.f32.partialorder %v554, 0.0
        %vm1456 = vcmp.ne.f32.partialorder %v555, 0.0
        %vm1457 = vcmp.ne.f32.partialorder %v556, 0.0
        %vm1458 = vcmp.ne.f32.partialorder %v557, 0.0
        %vm1459 = vcmp.ne.f32.partialorder %v558, 0.0
        %vm1460 = vcmp.ne.f32.partialorder %v559, 0.0
        %vm1461 = vcmp.ne.f32.partialorder %v560, 0.0
        %vm1462 = vcmp.ne.f32.partialorder %v561, 0.0
        %vm1463 = vcmp.ne.f32.partialorder %v562, 0.0
        %vm1464 = vcmp.ne.f32.partialorder %v563, 0.0
        %vm1465 = vcmp.ne.f32.partialorder %v564, 0.0
        %vm1466 = vcmp.ne.f32.partialorder %v565, 0.0
        %vm1467 = vcmp.ne.f32.partialorder %v566, 0.0
        %vm1468 = vcmp.ne.f32.partialorder %v567, 0.0
        %vm1469 = vcmp.ne.f32.partialorder %v568, 0.0
        %v1470 = vsel %vm1438, %v1390, 0.0
        %v1471 = vsel %vm1439, %v1391, 0.0
        %v1472 = vsel %vm1440, %v1392, 0.0
        %v1473 = vsel %vm1441, %v1393, 0.0
        %v1474 = vsel %vm1442, %v1394, 0.0
        %v1475 = vsel %vm1443, %v1395, 0.0
        %v1476 = vsel %vm1444, %v1396, 0.0
        %v1477 = vsel %vm1445, %v1397, 0.0
        %v1478 = vsel %vm1446, %v1398, 0.0
        %v1479 = vsel %vm1447, %v1399, 0.0
        %v1480 = vsel %vm1448, %v1400, 0.0
        %v1481 = vsel %vm1449, %v1401, 0.0
        %v1482 = vsel %vm1450, %v1402, 0.0
        %v1483 = vsel %vm1451, %v1403, 0.0
        %v1484 = vsel %vm1452, %v1404, 0.0
        %v1485 = vsel %vm1453, %v1405, 0.0
        %v1486 = vsel %vm1454, %v1422, 0.0
        %v1487 = vsel %vm1455, %v1423, 0.0
        %v1488 = vsel %vm1456, %v1424, 0.0
        %v1489 = vsel %vm1457, %v1425, 0.0
        %v1490 = vsel %vm1458, %v1426, 0.0
        %v1491 = vsel %vm1459, %v1427, 0.0
        %v1492 = vsel %vm1460, %v1428, 0.0
        %v1493 = vsel %vm1461, %v1429, 0.0
        %v1494 = vsel %vm1462, %v1430, 0.0
        %v1495 = vsel %vm1463, %v1431, 0.0
        %v1496 = vsel %vm1464, %v1432, 0.0
        %v1497 = vsel %vm1465, %v1433, 0.0
        %v1498 = vsel %vm1466, %v1434, 0.0
        %v1499 = vsel %vm1467, %v1435, 0.0
        %v1500 = vsel %vm1468, %v1436, 0.0
        %v1501 = vsel %vm1469, %v1437, 0.0
        %1502 = vst.msk [vmem:[%s500] sm:$0xff] %vm619, %v1470
        %1503 = vst.msk [vmem:[%s500 + $0x8] sm:$0xff] %vm619, %v1471
        %1504 = vst.msk [vmem:[%s500 + $0x10] sm:$0xff] %vm619, %v1472
        %1505 = vst.msk [vmem:[%s500 + $0x18] sm:$0xff] %vm619, %v1473
        %1506 = vst.msk [vmem:[%s500 + $0x20] sm:$0xff] %vm619, %v1474
        %1507 = vst.msk [vmem:[%s500 + $0x28] sm:$0xff] %vm619, %v1475
        %1508 = vst.msk [vmem:[%s500 + $0x30] sm:$0xff] %vm619, %v1476
        %1509 = vst.msk [vmem:[%s500 + $0x38] sm:$0xff] %vm619, %v1477
        %1510 = vst.msk [vmem:[%s500 + $0x40] sm:$0xff] %vm619, %v1478
        %1511 = vst.msk [vmem:[%s500 + $0x48] sm:$0xff] %vm619, %v1479
        %1512 = vst.msk [vmem:[%s500 + $0x50] sm:$0xff] %vm619, %v1480
        %1513 = vst.msk [vmem:[%s500 + $0x58] sm:$0xff] %vm619, %v1481
        %1514 = vst.msk [vmem:[%s500 + $0x60] sm:$0xff] %vm619, %v1482
        %1515 = vst.msk [vmem:[%s500 + $0x68] sm:$0xff] %vm619, %v1483
        %1516 = vst.msk [vmem:[%s500 + $0x70] sm:$0xff] %vm619, %v1484
        %1517 = vst.msk [vmem:[%s500 + $0x78] sm:$0xff] %vm619, %v1485
        %1518 = vst.msk [vmem:[%s500 + $0x80] sm:$0xff] %vm619, %v1486
        %1519 = vst.msk [vmem:[%s500 + $0x88] sm:$0xff] %vm619, %v1487
        %1520 = vst.msk [vmem:[%s500 + $0x90] sm:$0xff] %vm619, %v1488
        %1521 = vst.msk [vmem:[%s500 + $0x98] sm:$0xff] %vm619, %v1489
        %1522 = vst.msk [vmem:[%s500 + $0xa0] sm:$0xff] %vm619, %v1490
        %1523 = vst.msk [vmem:[%s500 + $0xa8] sm:$0xff] %vm619, %v1491
        %1524 = vst.msk [vmem:[%s500 + $0xb0] sm:$0xff] %vm619, %v1492
        %1525 = vst.msk [vmem:[%s500 + $0xb8] sm:$0xff] %vm619, %v1493
        %1526 = vst.msk [vmem:[%s500 + $0xc0] sm:$0xff] %vm619, %v1494
        %1527 = vst.msk [vmem:[%s500 + $0xc8] sm:$0xff] %vm619, %v1495
        %1528 = vst.msk [vmem:[%s500 + $0xd0] sm:$0xff] %vm619, %v1496
        %1529 = vst.msk [vmem:[%s500 + $0xd8] sm:$0xff] %vm619, %v1497
        %1530 = vst.msk [vmem:[%s500 + $0xe0] sm:$0xff] %vm619, %v1498
        %1531 = vst.msk [vmem:[%s500 + $0xe8] sm:$0xff] %vm619, %v1499
        %1532 = vst.msk [vmem:[%s500 + $0xf0] sm:$0xff] %vm619, %v1500
        %1533 = vst.msk [vmem:[%s500 + $0xf8] sm:$0xff] %vm619, %v1501
        %v1536 = vcombine.low %v965, %v967
        %1538 = vst [vmem:[%s507] sm:$0xff] %v1536
        %s1539 = sand.u32 %s337, 1
        %s1540 = sand.u32 %s337, 1
        %s1541 = smul.addr %s1540, 256
        %s1542 = scalar_lea.vmem [#allocation2], %s1541
        %s1543 = sand.u32 %s363, 1
        %s1544 = scalar_lea.sflag [#allocation4], %s1543
        %s1545 = sand.u32 %s363, 1
        %s1546 = smul.addr %s1545, 8
        %s1547 = scalar_lea.vmem [#allocation3], %s1546
        // Predicated region
        $region77: #{tpu_custom_call.1} parent=75 // pred_check
          %p1548 = pneg %p347
        $region78: #{tpu_custom_call.1} parent=75 // pred_check_branch
          %1550 = sbr.rel (%p1548) target = $region80
        $region79: #{tpu_custom_call.1} parent=75 // pred_region
          %s1551 = smul.u32 32, %s30
          %s1552 = ssub.s32 98, %s1551
          %p1553 = scmp.lt.s32.totalorder %s1552, 32
          %s1554 = scalar_select %p1553, %s1552, 32
          %s1555 = smul.u32 128, %s1554
          %p1556 = scmp.ne.s32.totalorder 0, %s1555
          %s1557 = smul.addr %s1551, 8
          %s1558 = scalar_lea.vmem %s14, %s1557
          // Predicated region
          $region81: #{tpu_custom_call.1} parent=79 // pred_check
            %p1559 = pneg %p1556
          $region82: #{tpu_custom_call.1} parent=79 // pred_check_branch
            %1561 = sbr.rel (%p1559) target = $region84
          $region83: #{tpu_custom_call.1} parent=79 // pred_region
            // Predicated region
            $region85: #{tpu_custom_call.1} parent=83 // pred_check
              _
            $region86: #{tpu_custom_call.1} parent=83 // pred_check_branch
              %1563 = sbr.rel (0) target = $region88
            $region87: #{tpu_custom_call.1} parent=83 // pred_region
              // Predicated region
              $region107: #{tpu_custom_call.1} parent=87 // pred_check
                _
              $region108: #{tpu_custom_call.1} parent=87 // pred_check_branch
                %1674 = sbr.rel (0) target = $region110
              $region109: #{tpu_custom_call.1} parent=87 // pred_region
                %s1675 = sshrl.u32 %s1554, 5
                // While loop
                $region111: #{tpu_custom_call.1} parent=109 // loop_pre_header
                  _
                $region112: #{tpu_custom_call.1} parent=109 // loop_header
                  %s1677 = sphi 0, %s1679
                  %p1678 = scmp.ge.s32.totalorder %s1677, %s1675
                  %s1682 = sphi 0, %s1751
                  %s1683 = sphi %s1542, %s1754
                  %s1684 = sphi %s1558, %s1755
                $region113: #{tpu_custom_call.1} parent=109 // loop_header_branch
                  %1681 = sbr.rel (%p1678) target = $region117
                $region114: #{tpu_custom_call.1} parent=109 // loop_body
                  %v1685 = vld [vmem:[%s1683] sm:$0xff]
                  %1686 = vst [vmem:[%s1684] sm:$0xff] %v1685
                  %v1687 = vld [vmem:[%s1683 + $0x8] sm:$0xff]
                  %1688 = vst [vmem:[%s1684 + $0x8] sm:$0xff] %v1687
                  %v1689 = vld [vmem:[%s1683 + $0x10] sm:$0xff]
                  %1690 = vst [vmem:[%s1684 + $0x10] sm:$0xff] %v1689
                  %v1691 = vld [vmem:[%s1683 + $0x18] sm:$0xff]
                  %1692 = vst [vmem:[%s1684 + $0x18] sm:$0xff] %v1691
                  %v1693 = vld [vmem:[%s1683 + $0x20] sm:$0xff]
                  %1694 = vst [vmem:[%s1684 + $0x20] sm:$0xff] %v1693
                  %v1695 = vld [vmem:[%s1683 + $0x28] sm:$0xff]
                  %1696 = vst [vmem:[%s1684 + $0x28] sm:$0xff] %v1695
                  %v1697 = vld [vmem:[%s1683 + $0x30] sm:$0xff]
                  %1698 = vst [vmem:[%s1684 + $0x30] sm:$0xff] %v1697
                  %v1699 = vld [vmem:[%s1683 + $0x38] sm:$0xff]
                  %1700 = vst [vmem:[%s1684 + $0x38] sm:$0xff] %v1699
                  %v1701 = vld [vmem:[%s1683 + $0x40] sm:$0xff]
                  %1702 = vst [vmem:[%s1684 + $0x40] sm:$0xff] %v1701
                  %v1703 = vld [vmem:[%s1683 + $0x48] sm:$0xff]
                  %1704 = vst [vmem:[%s1684 + $0x48] sm:$0xff] %v1703
                  %v1705 = vld [vmem:[%s1683 + $0x50] sm:$0xff]
                  %1706 = vst [vmem:[%s1684 + $0x50] sm:$0xff] %v1705
                  %v1707 = vld [vmem:[%s1683 + $0x58] sm:$0xff]
                  %1708 = vst [vmem:[%s1684 + $0x58] sm:$0xff] %v1707
                  %v1709 = vld [vmem:[%s1683 + $0x60] sm:$0xff]
                  %1710 = vst [vmem:[%s1684 + $0x60] sm:$0xff] %v1709
                  %v1711 = vld [vmem:[%s1683 + $0x68] sm:$0xff]
                  %1712 = vst [vmem:[%s1684 + $0x68] sm:$0xff] %v1711
                  %v1713 = vld [vmem:[%s1683 + $0x70] sm:$0xff]
                  %1714 = vst [vmem:[%s1684 + $0x70] sm:$0xff] %v1713
                  %v1715 = vld [vmem:[%s1683 + $0x78] sm:$0xff]
                  %1716 = vst [vmem:[%s1684 + $0x78] sm:$0xff] %v1715
                  %v1717 = vld [vmem:[%s1683 + $0x80] sm:$0xff]
                  %1718 = vst [vmem:[%s1684 + $0x80] sm:$0xff] %v1717
                  %v1719 = vld [vmem:[%s1683 + $0x88] sm:$0xff]
                  %1720 = vst [vmem:[%s1684 + $0x88] sm:$0xff] %v1719
                  %v1721 = vld [vmem:[%s1683 + $0x90] sm:$0xff]
                  %1722 = vst [vmem:[%s1684 + $0x90] sm:$0xff] %v1721
                  %v1723 = vld [vmem:[%s1683 + $0x98] sm:$0xff]
                  %1724 = vst [vmem:[%s1684 + $0x98] sm:$0xff] %v1723
                  %v1725 = vld [vmem:[%s1683 + $0xa0] sm:$0xff]
                  %1726 = vst [vmem:[%s1684 + $0xa0] sm:$0xff] %v1725
                  %v1727 = vld [vmem:[%s1683 + $0xa8] sm:$0xff]
                  %1728 = vst [vmem:[%s1684 + $0xa8] sm:$0xff] %v1727
                  %v1729 = vld [vmem:[%s1683 + $0xb0] sm:$0xff]
                  %1730 = vst [vmem:[%s1684 + $0xb0] sm:$0xff] %v1729
                  %v1731 = vld [vmem:[%s1683 + $0xb8] sm:$0xff]
                  %1732 = vst [vmem:[%s1684 + $0xb8] sm:$0xff] %v1731
                  %v1733 = vld [vmem:[%s1683 + $0xc0] sm:$0xff]
                  %1734 = vst [vmem:[%s1684 + $0xc0] sm:$0xff] %v1733
                  %v1735 = vld [vmem:[%s1683 + $0xc8] sm:$0xff]
                  %1736 = vst [vmem:[%s1684 + $0xc8] sm:$0xff] %v1735
                  %v1737 = vld [vmem:[%s1683 + $0xd0] sm:$0xff]
                  %1738 = vst [vmem:[%s1684 + $0xd0] sm:$0xff] %v1737
                  %v1739 = vld [vmem:[%s1683 + $0xd8] sm:$0xff]
                  %1740 = vst [vmem:[%s1684 + $0xd8] sm:$0xff] %v1739
                  %v1741 = vld [vmem:[%s1683 + $0xe0] sm:$0xff]
                  %1742 = vst [vmem:[%s1684 + $0xe0] sm:$0xff] %v1741
                  %v1743 = vld [vmem:[%s1683 + $0xe8] sm:$0xff]
                  %1744 = vst [vmem:[%s1684 + $0xe8] sm:$0xff] %v1743
                  %v1745 = vld [vmem:[%s1683 + $0xf0] sm:$0xff]
                  %1746 = vst [vmem:[%s1684 + $0xf0] sm:$0xff] %v1745
                  %v1747 = vld [vmem:[%s1683 + $0xf8] sm:$0xff]
                  %1748 = vst [vmem:[%s1684 + $0xf8] sm:$0xff] %v1747
                  %s1749 = sadd.s32 1, %s1682
                  %p1750 = scmp.ge.s32.totalorder %s1749, %s1675
                  %s1751 = scalar_select %p1750, 0, %s1749
                  %s1752 = smul.u32 %s1751, 256
                  %s1753 = smul.u32 %s1751, 256
                  %s1754 = scalar_lea.vmem %s1542, %s1752 [#allocation2]
                  %s1755 = scalar_lea.vmem %s1558, %s1753
                $region115: #{tpu_custom_call.1} parent=109 // loop_footer
                  %s1679 = sadd.s32 %s1677, 1
                $region116: #{tpu_custom_call.1} parent=109 // loop_footer_branch
                  %1676 = sbr.rel target = $region112
                $region117: #{tpu_custom_call.1} parent=109 // loop_exit
                  _
                %s1756 = sshrl.u32 %s1554, 5
                %s1757 = sand.u32 %s1554, 31
                %s1758 = smul.u32 %s1756, 32
                %s1759 = smul.u32 8, %s1758
                %s1760 = scalar_lea.vmem %s1542, %s1759 [#allocation2]
                %s1761 = smul.u32 8, %s1758
                %s1762 = scalar_lea.vmem %s1558, %s1761
                // While loop
                $region118: #{tpu_custom_call.1} parent=109 // loop_pre_header
                  _
                $region119: #{tpu_custom_call.1} parent=109 // loop_header
                  %s1764 = sphi 0, %s1766
                  %p1765 = scmp.ge.s32.totalorder %s1764, %s1757
                  %s1769 = sphi 0, %s1776
                  %s1770 = sphi %s1760, %s1779
                  %s1771 = sphi %s1762, %s1780
                $region120: #{tpu_custom_call.1} parent=109 // loop_header_branch
                  %1768 = sbr.rel (%p1765) target = $region124
                $region121: #{tpu_custom_call.1} parent=109 // loop_body
                  %v1772 = vld [vmem:[%s1770] sm:$0xff]
                  %1773 = vst [vmem:[%s1771] sm:$0xff] %v1772
                  %s1774 = sadd.s32 1, %s1769
                  %p1775 = scmp.ge.s32.totalorder %s1774, %s1757
                  %s1776 = scalar_select %p1775, 0, %s1774
                  %s1777 = smul.u32 %s1776, 8
                  %s1778 = smul.u32 %s1776, 8
                  %s1779 = scalar_lea.vmem %s1760, %s1777 [#allocation2]
                  %s1780 = scalar_lea.vmem %s1762, %s1778
                $region122: #{tpu_custom_call.1} parent=109 // loop_footer
                  %s1766 = sadd.s32 %s1764, 1
                $region123: #{tpu_custom_call.1} parent=109 // loop_footer_branch
                  %1763 = sbr.rel target = $region119
                $region124: #{tpu_custom_call.1} parent=109 // loop_exit
                  _
              $region110: #{tpu_custom_call.1} parent=87 // pred_fallthru
                _
              // Predicated region
              $region125: #{tpu_custom_call.1} parent=87 // pred_check
                _
              $region126: #{tpu_custom_call.1} parent=87 // pred_check_branch
                %1782 = sbr.rel target = $region128
              $region127: #{tpu_custom_call.1} parent=87 // pred_region
                _
              $region128: #{tpu_custom_call.1} parent=87 // pred_fallthru
                _
            $region88: #{tpu_custom_call.1} parent=83 // pred_fallthru
              _
            // Predicated region
            $region89: #{tpu_custom_call.1} parent=83 // pred_check
              _
            $region90: #{tpu_custom_call.1} parent=83 // pred_check_branch
              %1565 = sbr.rel target = $region92
            $region91: #{tpu_custom_call.1} parent=83 // pred_region
              %s1567 = sshrl.u32 %s1554, 5
              // While loop
              $region93: #{tpu_custom_call.1} parent=91 // loop_pre_header
                _
              $region94: #{tpu_custom_call.1} parent=91 // loop_header
                %s1569 = sphi 0, %s1571
                %p1570 = scmp.ge.s32.totalorder %s1569, %s1567
                %s1574 = sphi 0, %s1643
                %s1575 = sphi %s1542, %s1646
                %s1576 = sphi %s1558, %s1647
              $region95: #{tpu_custom_call.1} parent=91 // loop_header_branch
                %1573 = sbr.rel (%p1570) target = $region99
              $region96: #{tpu_custom_call.1} parent=91 // loop_body
                %v1577 = vld [vmem:[%s1575] sm:$0xff]
                %1578 = vst [vmem:[%s1576] sm:$0xff] %v1577
                %v1579 = vld [vmem:[%s1575 + $0x8] sm:$0xff]
                %1580 = vst [vmem:[%s1576 + $0x8] sm:$0xff] %v1579
                %v1581 = vld [vmem:[%s1575 + $0x10] sm:$0xff]
                %1582 = vst [vmem:[%s1576 + $0x10] sm:$0xff] %v1581
                %v1583 = vld [vmem:[%s1575 + $0x18] sm:$0xff]
                %1584 = vst [vmem:[%s1576 + $0x18] sm:$0xff] %v1583
                %v1585 = vld [vmem:[%s1575 + $0x20] sm:$0xff]
                %1586 = vst [vmem:[%s1576 + $0x20] sm:$0xff] %v1585
                %v1587 = vld [vmem:[%s1575 + $0x28] sm:$0xff]
                %1588 = vst [vmem:[%s1576 + $0x28] sm:$0xff] %v1587
                %v1589 = vld [vmem:[%s1575 + $0x30] sm:$0xff]
                %1590 = vst [vmem:[%s1576 + $0x30] sm:$0xff] %v1589
                %v1591 = vld [vmem:[%s1575 + $0x38] sm:$0xff]
                %1592 = vst [vmem:[%s1576 + $0x38] sm:$0xff] %v1591
                %v1593 = vld [vmem:[%s1575 + $0x40] sm:$0xff]
                %1594 = vst [vmem:[%s1576 + $0x40] sm:$0xff] %v1593
                %v1595 = vld [vmem:[%s1575 + $0x48] sm:$0xff]
                %1596 = vst [vmem:[%s1576 + $0x48] sm:$0xff] %v1595
                %v1597 = vld [vmem:[%s1575 + $0x50] sm:$0xff]
                %1598 = vst [vmem:[%s1576 + $0x50] sm:$0xff] %v1597
                %v1599 = vld [vmem:[%s1575 + $0x58] sm:$0xff]
                %1600 = vst [vmem:[%s1576 + $0x58] sm:$0xff] %v1599
                %v1601 = vld [vmem:[%s1575 + $0x60] sm:$0xff]
                %1602 = vst [vmem:[%s1576 + $0x60] sm:$0xff] %v1601
                %v1603 = vld [vmem:[%s1575 + $0x68] sm:$0xff]
                %1604 = vst [vmem:[%s1576 + $0x68] sm:$0xff] %v1603
                %v1605 = vld [vmem:[%s1575 + $0x70] sm:$0xff]
                %1606 = vst [vmem:[%s1576 + $0x70] sm:$0xff] %v1605
                %v1607 = vld [vmem:[%s1575 + $0x78] sm:$0xff]
                %1608 = vst [vmem:[%s1576 + $0x78] sm:$0xff] %v1607
                %v1609 = vld [vmem:[%s1575 + $0x80] sm:$0xff]
                %1610 = vst [vmem:[%s1576 + $0x80] sm:$0xff] %v1609
                %v1611 = vld [vmem:[%s1575 + $0x88] sm:$0xff]
                %1612 = vst [vmem:[%s1576 + $0x88] sm:$0xff] %v1611
                %v1613 = vld [vmem:[%s1575 + $0x90] sm:$0xff]
                %1614 = vst [vmem:[%s1576 + $0x90] sm:$0xff] %v1613
                %v1615 = vld [vmem:[%s1575 + $0x98] sm:$0xff]
                %1616 = vst [vmem:[%s1576 + $0x98] sm:$0xff] %v1615
                %v1617 = vld [vmem:[%s1575 + $0xa0] sm:$0xff]
                %1618 = vst [vmem:[%s1576 + $0xa0] sm:$0xff] %v1617
                %v1619 = vld [vmem:[%s1575 + $0xa8] sm:$0xff]
                %1620 = vst [vmem:[%s1576 + $0xa8] sm:$0xff] %v1619
                %v1621 = vld [vmem:[%s1575 + $0xb0] sm:$0xff]
                %1622 = vst [vmem:[%s1576 + $0xb0] sm:$0xff] %v1621
                %v1623 = vld [vmem:[%s1575 + $0xb8] sm:$0xff]
                %1624 = vst [vmem:[%s1576 + $0xb8] sm:$0xff] %v1623
                %v1625 = vld [vmem:[%s1575 + $0xc0] sm:$0xff]
                %1626 = vst [vmem:[%s1576 + $0xc0] sm:$0xff] %v1625
                %v1627 = vld [vmem:[%s1575 + $0xc8] sm:$0xff]
                %1628 = vst [vmem:[%s1576 + $0xc8] sm:$0xff] %v1627
                %v1629 = vld [vmem:[%s1575 + $0xd0] sm:$0xff]
                %1630 = vst [vmem:[%s1576 + $0xd0] sm:$0xff] %v1629
                %v1631 = vld [vmem:[%s1575 + $0xd8] sm:$0xff]
                %1632 = vst [vmem:[%s1576 + $0xd8] sm:$0xff] %v1631
                %v1633 = vld [vmem:[%s1575 + $0xe0] sm:$0xff]
                %1634 = vst [vmem:[%s1576 + $0xe0] sm:$0xff] %v1633
                %v1635 = vld [vmem:[%s1575 + $0xe8] sm:$0xff]
                %1636 = vst [vmem:[%s1576 + $0xe8] sm:$0xff] %v1635
                %v1637 = vld [vmem:[%s1575 + $0xf0] sm:$0xff]
                %1638 = vst [vmem:[%s1576 + $0xf0] sm:$0xff] %v1637
                %v1639 = vld [vmem:[%s1575 + $0xf8] sm:$0xff]
                %1640 = vst [vmem:[%s1576 + $0xf8] sm:$0xff] %v1639
                %s1641 = sadd.s32 1, %s1574
                %p1642 = scmp.ge.s32.totalorder %s1641, %s1567
                %s1643 = scalar_select %p1642, 0, %s1641
                %s1644 = smul.u32 %s1643, 256
                %s1645 = smul.u32 %s1643, 256
                %s1646 = scalar_lea.vmem %s1542, %s1644 [#allocation2]
                %s1647 = scalar_lea.vmem %s1558, %s1645
              $region97: #{tpu_custom_call.1} parent=91 // loop_footer
                %s1571 = sadd.s32 %s1569, 1
              $region98: #{tpu_custom_call.1} parent=91 // loop_footer_branch
                %1568 = sbr.rel target = $region94
              $region99: #{tpu_custom_call.1} parent=91 // loop_exit
                _
              %s1648 = sshrl.u32 %s1554, 5
              %s1649 = sand.u32 %s1554, 31
              %s1650 = smul.u32 %s1648, 32
              %s1651 = smul.u32 8, %s1650
              %s1652 = scalar_lea.vmem %s1542, %s1651 [#allocation2]
              %s1653 = smul.u32 8, %s1650
              %s1654 = scalar_lea.vmem %s1558, %s1653
              // While loop
              $region100: #{tpu_custom_call.1} parent=91 // loop_pre_header
                _
              $region101: #{tpu_custom_call.1} parent=91 // loop_header
                %s1656 = sphi 0, %s1658
                %p1657 = scmp.ge.s32.totalorder %s1656, %s1649
                %s1661 = sphi 0, %s1668
                %s1662 = sphi %s1652, %s1671
                %s1663 = sphi %s1654, %s1672
              $region102: #{tpu_custom_call.1} parent=91 // loop_header_branch
                %1660 = sbr.rel (%p1657) target = $region106
              $region103: #{tpu_custom_call.1} parent=91 // loop_body
                %v1664 = vld [vmem:[%s1662] sm:$0xff]
                %1665 = vst [vmem:[%s1663] sm:$0xff] %v1664
                %s1666 = sadd.s32 1, %s1661
                %p1667 = scmp.ge.s32.totalorder %s1666, %s1649
                %s1668 = scalar_select %p1667, 0, %s1666
                %s1669 = smul.u32 %s1668, 8
                %s1670 = smul.u32 %s1668, 8
                %s1671 = scalar_lea.vmem %s1652, %s1669 [#allocation2]
                %s1672 = scalar_lea.vmem %s1654, %s1670
              $region104: #{tpu_custom_call.1} parent=91 // loop_footer
                %s1658 = sadd.s32 %s1656, 1
              $region105: #{tpu_custom_call.1} parent=91 // loop_footer_branch
                %1655 = sbr.rel target = $region101
              $region106: #{tpu_custom_call.1} parent=91 // loop_exit
                _
            $region92: #{tpu_custom_call.1} parent=83 // pred_fallthru
              _
          $region84: #{tpu_custom_call.1} parent=79 // pred_fallthru
            _
          %1783 = vnop
        $region80: #{tpu_custom_call.1} parent=75 // pred_fallthru
          _
        // Predicated region
        $region129: #{tpu_custom_call.1} parent=75 // pred_check
          %p1784 = pneg %p373
        $region130: #{tpu_custom_call.1} parent=75 // pred_check_branch
          %1786 = sbr.rel (%p1784) target = $region132
        $region131: #{tpu_custom_call.1} parent=75 // pred_region
          %s1787 = smul.u32 2, %s30
          %s1788 = ssub.s32 7, %s1787
          %p1789 = scmp.lt.s32.totalorder %s1788, 2
          %s1790 = scalar_select %p1789, %s1788, 2
          %s1791 = smul.u32 64, %s1790
          %s1793 = ssub.s32 128, %s1791
          %1794 = vsyncadd %s1544, %s1793
          %p1795 = scmp.ne.s32.totalorder 0, %s1791
          %s1796 = smul.addr %s1787, 64
          %s1797 = scalar_lea.hbm %s15, %s1796
          %s1798 = smul.u32 %s1790, 4
          %s1799 = sshll.u32 %s1798, 4
          %s1800 = sshll.u32 %s1547, 4
          %s1801 = int_to_ptr.vmem [resolvable:$true] %s1800
          %1803 = dma.vmem_to_hbm [thread:$0]  (%p1795), %s1801, %s1799, %s1797, %s1544
        $region132: #{tpu_custom_call.1} parent=75 // pred_fallthru
          _
      $region76: #{tpu_custom_call.1} parent=5 // pred_fallthru
        _
      %p1804 = scmp.le.s32.totalorder 2, %s25
      // Predicated region
      $region133: #{tpu_custom_call.1} parent=5 // pred_check
        %p1805 = pneg %p1804
      $region134: #{tpu_custom_call.1} parent=5 // pred_check_branch
        %1807 = sbr.rel (%p1805) target = $region136
      $region135: #{tpu_custom_call.1} parent=5 // pred_region
        %s1808 = ssub.s32 %s25, 2
        // Predicated region
        $region137: #{tpu_custom_call.1} parent=135 // pred_check
          %p1809 = pneg %p353
        $region138: #{tpu_custom_call.1} parent=135 // pred_check_branch
          %1811 = sbr.rel (%p1809) target = $region140
        $region139: #{tpu_custom_call.1} parent=135 // pred_region
          %s1812 = sand.u32 %s338, 1
          %s1813 = sand.u32 %s338, 1
          %s1814 = smul.addr %s1813, 256
          %s1815 = scalar_lea.vmem [#allocation2], %s1814
        $region140: #{tpu_custom_call.1} parent=135 // pred_fallthru
          _
        // Predicated region
        $region141: #{tpu_custom_call.1} parent=135 // pred_check
          %p1816 = pneg %p379
        $region142: #{tpu_custom_call.1} parent=135 // pred_check_branch
          %1818 = sbr.rel (%p1816) target = $region144
        $region143: #{tpu_custom_call.1} parent=135 // pred_region
          %s1819 = sand.u32 %s364, 1
          %s1820 = scalar_lea.sflag [#allocation4], %s1819
          %s1821 = sand.u32 %s364, 1
          %s1822 = smul.addr %s1821, 8
          %s1823 = scalar_lea.vmem [#allocation3], %s1822
          %1824 = dma.done %s1820, 128
        $region144: #{tpu_custom_call.1} parent=135 // pred_fallthru
          _
      $region136: #{tpu_custom_call.1} parent=5 // pred_fallthru
        _
    $region6: #{tpu_custom_call.1} parent=1 // loop_footer
      %s29 = sadd.s32 1, %s25
    $region7: #{tpu_custom_call.1} parent=1 // loop_footer_branch
      %24 = sbr.rel target = $region3
    $region8: #{tpu_custom_call.1} parent=1 // loop_exit
      _
    %1825 = vsyncpa [#allocation4], 1
    %s1826 = scalar_lea.sflag [#allocation4], 1
    %1827 = vsyncpa %s1826, 1

</llo_original>
